<compile_context>
chip_gen: v5e
topology: v5e:2x2
jax: 0.10.0
libtpu: 0.0.40
codegen_flags: <defaults>
</compile_context>

<pallas_src>
import numpy as np
import jax
import jax.numpy as jnp
from jax.experimental import pallas as pl
from jax.experimental.pallas import tpu as pltpu


# ---------------------------------------------------------------------------
# Circular padding (NHWC) matching the PyTorch CircularPadding module:
# zero-pad H by p, wrap W circularly by p, corners stay zero.
# ---------------------------------------------------------------------------
def circular_pad(x, p):
    if p == 0:
        return x
    x = jnp.concatenate([x[:, :, -p:, :], x, x[:, :, :p, :]], axis=2)  # W wrap
    return jnp.pad(x, ((0, 0), (p, p), (0, 0), (0, 0)))                # H zeros


# ---------------------------------------------------------------------------
# Tile-size selection.
# ---------------------------------------------------------------------------
def _choose_th(hout, wout, tc):
    """Largest divisor TH of hout with a bounded f32 accumulator (<=512 KiB)
    and TH*Wout around 256 (enough MXU M-rows, no giant spilled acc)."""
    best = 1
    for th in range(1, hout + 1):
        if hout % th:
            continue
        if th * wout * tc * 4 > (512 << 10):      # accumulator byte cap
            break
        best = th
        if th * wout >= 256:                      # enough rows for the MXU
            break
    return best


def _choose_epilogue_th(hout, wout, cout):
    """Largest divisor of hout whose (bf16 in + f32 out) tile stays <= ~4 MiB."""
    best = 1
    for th in range(1, hout + 1):
        if hout % th:
            continue
        if th * wout * cout * 6 > (4 << 20):
            break
        best = th
    return best


# ---------------------------------------------------------------------------
# Pallas conv kernel: TH output rows x one Cout tile per grid step, plus
# per-(n, cout-tile) BatchNorm statistics accumulated across the h axis.
# ---------------------------------------------------------------------------
def _conv_rows_kernel(x_ref, w_ref, o_ref, stats_ref):
    """x_ref:     (1, Hp, Wp, Cin)   f32   whole padded image n (VMEM resident)
       w_ref:     (K, K*Cin, TC)     bf16  weights for this Cout tile
       o_ref:     (1, TH, Wout, TC)  bf16  TH output rows of image n
       stats_ref: (1, 2, TC)         f32   [sum ; sumsq], accumulated over h
    """
    hb = pl.program_id(2)
    K = w_ref.shape[0]
    TH, Wout, TC = o_ref.shape[1], o_ref.shape[2], o_ref.shape[3]
    Wp, Cin = x_ref.shape[2], x_ref.shape[3]

    # Rows [h0, h0 + TH + K - 1) of the padded image cover this output block.
    h0 = hb * TH
    slab = x_ref[0, pl.ds(h0, TH + K - 1), :, :]             # (TH+K-1, Wp, Cin)

    # Fold the kx taps into the MXU contraction: lane-concatenate K W-shifted
    # copies.  The shifts are XLU rolls, so every slice start stays aligned
    # (no unaligned sublane slices / relayout copies per tap).
    parts = []
    for kx in range(K):
        shifted = slab if kx == 0 else pltpu.roll(slab, shift=Wp - kx, axis=1)
        parts.append(shifted[:, :Wout, :])                   # aligned slice
    cat = jnp.concatenate(parts, axis=-1).astype(jnp.bfloat16)  # (TH+K-1, Wout, K*Cin)

    # K matmuls with contraction K*Cin (instead of K*K matmuls with Cin).
    acc = jnp.zeros((TH * Wout, TC), jnp.float32)
    for ky in range(K):
        lhs = cat[ky:ky + TH].reshape(TH * Wout, K * Cin)    # leading-dim slice
        acc = acc + jnp.dot(lhs, w_ref[ky],
                            preferred_element_type=jnp.float32)

    # NOTE: no conv-bias add here — it is cancelled exactly by the
    # batch-statistic BatchNorm that always follows this conv in ConvBlock.
    o_ref[0, :, :, :] = acc.reshape(TH, Wout, TC).astype(o_ref.dtype)

    # BN partial sums, accumulated into the VMEM-resident stats block across
    # the innermost ("arbitrary") h axis -> one HBM write per (n, cout-tile).
    s1 = jnp.sum(acc, axis=0, keepdims=True)
    s2 = jnp.sum(acc * acc, axis=0, keepdims=True)
    blk = jnp.concatenate([s1, s2], axis=0)                  # (2, TC)

    @pl.when(hb == 0)
    def _():
        stats_ref[0] = blk

    @pl.when(hb > 0)
    def _():
        stats_ref[0] = stats_ref[0] + blk


def conv2d_circular_with_stats(x, w, pad):
    """Circular-padded, stride-1, bias-less conv on the MXU (bf16 operands,
    f32 accumulation).  Returns (y_bf16, sum_c, sumsq_c) where sum_c / sumsq_c
    are per-channel sums of y over (N, Hout, Wout)."""
    # TODO(synk): stride > 1 ConvBlock configs are not implemented (every FAED
    #             decoder ConvBlock uses stride=1).
    K = w.shape[0]
    Cin = w.shape[2]
    Cout = w.shape[3]

    xp = circular_pad(x.astype(jnp.float32), pad)
    N, Hp, Wp, _ = xp.shape
    Hout = Hp - K + 1
    Wout = Wp - K + 1

    # Pad W up to a multiple of 8 so sublane rolls / loads stay tile aligned.
    # The extra zero columns are never read by valid output positions.
    Wp8 = -(-Wp // 8) * 8
    if Wp8 != Wp:
        xp = jnp.pad(xp, ((0, 0), (0, 0), (0, Wp8 - Wp), (0, 0)))

    # Cout tile (bounds the accumulator / weight block for large channel counts).
    TC = 256 if (Cout > 256 and Cout % 256 == 0) else Cout
    n_cb = Cout // TC
    TH = _choose_th(Hout, Wout, TC)
    n_hb = Hout // TH

    # Weights: (K, K, Cin, Cout) -> (K, K*Cin, Cout), bf16 for the MXU.
    w2 = w.reshape(K, K * Cin, Cout).astype(jnp.bfloat16)

    # Explicit VMEM budget (image + weights + blocks, double buffered), clamped
    # so the same config fits v7x's 64 MiB as well as v5e/v6e's 128 MiB.
    per_buf = (Hp * Wp8 * Cin * 4 + K * K * Cin * TC * 2
               + TH * Wout * TC * 2 + 2 * TC * 4)
    vmem_limit = int(min(56 << 20, max(32 << 20, 2 * per_buf + (4 << 20))))

    if N >= 2:    # megacore: shard batch; keep the image resident across h.
        dims = ("parallel", "arbitrary", "arbitrary")
    else:         # single image: shard Cout tiles instead (h must accumulate).
        dims = ("arbitrary", "parallel", "arbitrary")

    flops = 2 * N * Hout * Wout * K * K * Cin * Cout
    bytes_accessed = (xp.size * 4 + w2.size * 2
                      + N * Hout * Wout * Cout * 2 + N * 2 * Cout * 4)

    y, stats = pl.pallas_call(
        _conv_rows_kernel,
        out_shape=(
            jax.ShapeDtypeStruct((N, Hout, Wout, Cout), jnp.bfloat16),
            jax.ShapeDtypeStruct((N, 2, Cout), jnp.float32),
        ),
        grid=(N, n_cb, n_hb),
        in_specs=[
            # Whole padded image n stays VMEM-resident across the (c, h) axes.
            pl.BlockSpec((1, Hp, Wp8, Cin), lambda n, c, h: (n, 0, 0, 0)),
            pl.BlockSpec((K, K * Cin, TC), lambda n, c, h: (0, 0, c)),
        ],
        out_specs=(
            pl.BlockSpec((1, TH, Wout, TC), lambda n, c, h: (n, h, 0, c)),
            pl.BlockSpec((1, 2, TC), lambda n, c, h: (n, 0, c)),
        ),
        compiler_params=pltpu.CompilerParams(
            dimension_semantics=dims, vmem_limit_bytes=vmem_limit),
        cost_estimate=pl.CostEstimate(
            flops=flops, transcendentals=0, bytes_accessed=bytes_accessed),
    )(xp, w2)

    sum_c = jnp.sum(stats[:, 0, :], axis=0)
    sumsq_c = jnp.sum(stats[:, 1, :], axis=0)
    return y, sum_c, sumsq_c


# ---------------------------------------------------------------------------
# Fused BatchNorm-affine + ReLU epilogue (single bf16 read + single f32 write).
# ---------------------------------------------------------------------------
def _bn_relu_kernel(y_ref, scale_ref, shift_ref, o_ref):
    y = y_ref[0, :, :, :].astype(jnp.float32)     # (TH2, Wout, Cout)
    s = scale_ref[...]                            # (1, Cout)
    t = shift_ref[...]                            # (1, Cout)
    z = y * s[None, :, :] + t[None, :, :]
    o_ref[0, :, :, :] = jnp.maximum(z, 0.0).astype(o_ref.dtype)


def bn_relu(y, scale, shift):
    N, Hout, Wout, Cout = y.shape
    TH2 = _choose_epilogue_th(Hout, Wout, Cout)
    n_hb = Hout // TH2
    return pl.pallas_call(
        _bn_relu_kernel,
        out_shape=jax.ShapeDtypeStruct((N, Hout, Wout, Cout), jnp.float32),
        grid=(N, n_hb),
        in_specs=[
            pl.BlockSpec((1, TH2, Wout, Cout), lambda n, h: (n, h, 0, 0)),
            pl.BlockSpec((1, Cout), lambda n, h: (0, 0)),
            pl.BlockSpec((1, Cout), lambda n, h: (0, 0)),
        ],
        out_specs=pl.BlockSpec((1, TH2, Wout, Cout), lambda n, h: (n, h, 0, 0)),
        compiler_params=pltpu.CompilerParams(
            dimension_semantics=("parallel", "parallel")),
        cost_estimate=pl.CostEstimate(
            flops=3 * N * Hout * Wout * Cout, transcendentals=0,
            bytes_accessed=(y.size * 2 + N * Hout * Wout * Cout * 4
                            + 2 * Cout * 4)),
    )(y, scale.reshape(1, Cout), shift.reshape(1, Cout))


# ---------------------------------------------------------------------------
# ConvBlock forward: relu(bn(conv(circular_pad(x)))), training-mode BN
# (batch statistics, biased variance) — the nn.BatchNorm2d default.
# ---------------------------------------------------------------------------
def conv_block_apply(p, x, pad, eps=1e-5):
    y, s1, s2 = conv2d_circular_with_stats(x, p["w"], pad)
    N, Hout, Wout, _ = y.shape
    count = float(N * Hout * Wout)
    mean = s1 / count
    var = jnp.maximum(s2 / count - mean * mean, 0.0)    # biased batch variance
    inv = jax.lax.rsqrt(var + eps)
    scale = p["gamma"] * inv
    shift = p["beta"] - mean * scale
    return bn_relu(y, scale, shift)


def conv_block_forward(params, x_nchw, pad):
    x = jnp.transpose(x_nchw, (0, 2, 3, 1)).astype(jnp.float32)   # NCHW -> NHWC
    y = conv_block_apply(params, x, pad)
    return jnp.transpose(y, (0, 3, 1, 2))                         # NHWC -> NCHW


# ---------------------------------------------------------------------------
# Deterministic synthetic parameters (nn.Conv2d / nn.BatchNorm2d defaults).
# The conv bias `b` is kept for fidelity but is mathematically cancelled by
# the batch-stat BatchNorm, so the Pallas path never applies it.
# ---------------------------------------------------------------------------
def init_conv_block_params(key, cin, cout, k):
    bound = 1.0 / np.sqrt(cin * k * k)
    kw, kb = jax.random.split(key)
    w = jax.random.uniform(kw, (k, k, cin, cout), jnp.float32, -bound, bound)
    b = jax.random.uniform(kb, (cout,), jnp.float32, -bound, bound)
    return dict(w=w, b=b,
                gamma=jnp.ones((cout,), jnp.float32),
                beta=jnp.zeros((cout,), jnp.float32))


# Faithful plain-JAX f32 reference (includes the conv bias explicitly).
def conv_block_reference(params, x_nchw, pad, eps=1e-5):
    x = jnp.transpose(x_nchw, (0, 2, 3, 1)).astype(jnp.float32)
    xp = circular_pad(x, pad)
    y = jax.lax.conv_general_dilated(
        xp, params["w"], window_strides=(1, 1), padding="VALID",
        dimension_numbers=("NHWC", "HWIO", "NHWC")) + params["b"]
    mean = jnp.mean(y, axis=(0, 1, 2), keepdims=True)
    var = jnp.mean(jnp.square(y - mean), axis=(0, 1, 2), keepdims=True)
    y = params["gamma"] * (y - mean) * jax.lax.rsqrt(var + eps) + params["beta"]
    y = jnp.maximum(y, 0.0)
    return jnp.transpose(y, (0, 3, 1, 2))


if __name__ == "__main__":
    key = jax.random.PRNGKey(0)
    kp, kx = jax.random.split(key)

    # ConvBlock(in_channels=32, out_channels=128, kernel_size=3, stride=1,
    #           padding=1) on a 16x16 input, batch 2.
    N, Cin, H, W = 2, 32, 16, 16
    Cout, K = 128, 3
    pad = (K - 1) // 2

    params = init_conv_block_params(kp, Cin, Cout, K)
    x = jax.random.normal(kx, (N, Cin, H, W), jnp.float32)       # NCHW like torch

    fwd = jax.jit(lambda p, xx: conv_block_forward(p, xx, pad))
    out = jax.block_until_ready(fwd(params, x))

    assert out.shape == (N, Cout, H, W), out.shape
    assert bool(jnp.all(jnp.isfinite(out)))

    ref = jax.block_until_ready(
        jax.jit(lambda p, xx: conv_block_reference(p, xx, pad))(params, x))
    # bf16 MXU operands + bf16 conv activation -> compare at bf16-level tolerance
    # against the full-f32 reference.
    max_err = float(jnp.max(jnp.abs(out - ref)))
    assert bool(jnp.allclose(out, ref, rtol=5e-2, atol=5e-2)), max_err

    print("KERNEL_OK")
</pallas_src>

<mosaic_0001>
module attributes {stable_mosaic.version = 11 : i64} {
  func.func @_conv_rows_kernel(%arg0: i32, %arg1: i32, %arg2: i32, %arg3: memref<1x18x24x32xf32, #tpu.memory_space<vmem>>, %arg4: memref<3x96x128xbf16, #tpu.memory_space<vmem>>, %arg5: memref<1x16x16x128xbf16, #tpu.memory_space<vmem>>, %arg6: memref<1x2x128xf32, #tpu.memory_space<vmem>>) attributes {dimension_semantics = [#tpu.dimension_semantics<parallel>, #tpu.dimension_semantics<arbitrary>, #tpu.dimension_semantics<arbitrary>], iteration_bounds = array<i64: 2, 1, 1>, scalar_prefetch = 0 : i64, scratch_operands = 0 : i64, tpu.core_type = #tpu.core_type<tc>, window_params = [{transform_indices = @transform_0, window_bounds = array<i64: 1, 18, 24, 32>}, {transform_indices = @transform_1, window_bounds = array<i64: 3, 96, 128>}, {transform_indices = @transform_2, window_bounds = array<i64: 1, 16, 16, 128>}, {transform_indices = @transform_3, window_bounds = array<i64: 1, 2, 128>}]} {
    %c16_i32 = arith.constant 16 : i32
    %0 = arith.muli %arg2, %c16_i32 : i32
    %c0 = arith.constant 0 : index
    %1 = arith.index_cast %0 : i32 to index
    %c0_0 = arith.constant 0 : index
    %c0_1 = arith.constant 0 : index
    %2 = vector.load %arg3[%c0, %1, %c0_0, %c0_1] : memref<1x18x24x32xf32, #tpu.memory_space<vmem>>, vector<1x18x24x32xf32>
    %3 = vector.shape_cast %2 : vector<1x18x24x32xf32> to vector<18x24x32xf32>
    %4 = vector.extract_strided_slice %3 {offsets = [0, 0, 0], sizes = [18, 16, 32], strides = [1, 1, 1]} : vector<18x24x32xf32> to vector<18x16x32xf32>
    %c23_i32 = arith.constant 23 : i32
    %5 = tpu.dynamic_rotate %3 by %c23_i32 dim 1 : vector<18x24x32xf32>, i32 -> vector<18x24x32xf32>
    %6 = vector.extract_strided_slice %5 {offsets = [0, 0, 0], sizes = [18, 16, 32], strides = [1, 1, 1]} : vector<18x24x32xf32> to vector<18x16x32xf32>
    %c22_i32 = arith.constant 22 : i32
    %7 = tpu.dynamic_rotate %3 by %c22_i32 dim 1 : vector<18x24x32xf32>, i32 -> vector<18x24x32xf32>
    %8 = vector.extract_strided_slice %7 {offsets = [0, 0, 0], sizes = [18, 16, 32], strides = [1, 1, 1]} : vector<18x24x32xf32> to vector<18x16x32xf32>
    %9 = tpu.concatenate %4, %6, %8 in 2 : vector<18x16x32xf32>, vector<18x16x32xf32>, vector<18x16x32xf32> -> vector<18x16x96xf32>
    %10 = arith.truncf %9 : vector<18x16x96xf32> to vector<18x16x96xbf16>
    %cst = arith.constant 0.000000e+00 : f32
    %11 = vector.broadcast %cst : f32 to vector<256x128xf32>
    %12 = vector.extract_strided_slice %10 {offsets = [0, 0, 0], sizes = [16, 16, 96], strides = [1, 1, 1]} : vector<18x16x96xbf16> to vector<16x16x96xbf16>
    %13 = vector.shape_cast %12 : vector<16x16x96xbf16> to vector<256x96xbf16>
    %c0_2 = arith.constant 0 : index
    %c0_3 = arith.constant 0 : index
    %c0_4 = arith.constant 0 : index
    %14 = vector.load %arg4[%c0_2, %c0_3, %c0_4] : memref<3x96x128xbf16, #tpu.memory_space<vmem>>, vector<1x96x128xbf16>
    %15 = vector.shape_cast %14 : vector<1x96x128xbf16> to vector<96x128xbf16>
    %cst_5 = arith.constant dense<0.000000e+00> : vector<256x128xf32>
    %16 = tpu.matmul %13, %15, %cst_5 {dimension_numbers = #tpu.dot_dimension_numbers<[1], [0], [0], [1], [0, 0, 1, 1], [], []>} : vector<256x96xbf16>, vector<96x128xbf16>, vector<256x128xf32> -> vector<256x128xf32>
    %17 = arith.addf %11, %16 : vector<256x128xf32>
    %18 = vector.extract_strided_slice %10 {offsets = [1, 0, 0], sizes = [16, 16, 96], strides = [1, 1, 1]} : vector<18x16x96xbf16> to vector<16x16x96xbf16>
    %19 = vector.shape_cast %18 : vector<16x16x96xbf16> to vector<256x96xbf16>
    %c1 = arith.constant 1 : index
    %c0_6 = arith.constant 0 : index
    %c0_7 = arith.constant 0 : index
    %20 = vector.load %arg4[%c1, %c0_6, %c0_7] : memref<3x96x128xbf16, #tpu.memory_space<vmem>>, vector<1x96x128xbf16>
    %21 = vector.shape_cast %20 : vector<1x96x128xbf16> to vector<96x128xbf16>
    %cst_8 = arith.constant dense<0.000000e+00> : vector<256x128xf32>
    %22 = tpu.matmul %19, %21, %cst_8 {dimension_numbers = #tpu.dot_dimension_numbers<[1], [0], [0], [1], [0, 0, 1, 1], [], []>} : vector<256x96xbf16>, vector<96x128xbf16>, vector<256x128xf32> -> vector<256x128xf32>
    %23 = arith.addf %17, %22 : vector<256x128xf32>
    %24 = vector.extract_strided_slice %10 {offsets = [2, 0, 0], sizes = [16, 16, 96], strides = [1, 1, 1]} : vector<18x16x96xbf16> to vector<16x16x96xbf16>
    %25 = vector.shape_cast %24 : vector<16x16x96xbf16> to vector<256x96xbf16>
    %c2 = arith.constant 2 : index
    %c0_9 = arith.constant 0 : index
    %c0_10 = arith.constant 0 : index
    %26 = vector.load %arg4[%c2, %c0_9, %c0_10] : memref<3x96x128xbf16, #tpu.memory_space<vmem>>, vector<1x96x128xbf16>
    %27 = vector.shape_cast %26 : vector<1x96x128xbf16> to vector<96x128xbf16>
    %cst_11 = arith.constant dense<0.000000e+00> : vector<256x128xf32>
    %28 = tpu.matmul %25, %27, %cst_11 {dimension_numbers = #tpu.dot_dimension_numbers<[1], [0], [0], [1], [0, 0, 1, 1], [], []>} : vector<256x96xbf16>, vector<96x128xbf16>, vector<256x128xf32> -> vector<256x128xf32>
    %29 = arith.addf %23, %28 : vector<256x128xf32>
    %30 = vector.shape_cast %29 : vector<256x128xf32> to vector<16x16x128xf32>
    %31 = arith.truncf %30 : vector<16x16x128xf32> to vector<16x16x128xbf16>
    %c0_12 = arith.constant 0 : index
    %c0_13 = arith.constant 0 : index
    %c0_14 = arith.constant 0 : index
    %c0_15 = arith.constant 0 : index
    %32 = vector.load %arg5[%c0_12, %c0_13, %c0_14, %c0_15] : memref<1x16x16x128xbf16, #tpu.memory_space<vmem>>, vector<1x16x16x128xbf16>
    %33 = vector.shape_cast %32 : vector<1x16x16x128xbf16> to vector<16x16x128xbf16>
    %34 = vector.shape_cast %31 : vector<16x16x128xbf16> to vector<1x16x16x128xbf16>
    tpu.vector_store %arg5[%c0_12, %c0_13, %c0_14, %c0_15], %34 {strides = array<i32>} : memref<1x16x16x128xbf16, #tpu.memory_space<vmem>>, vector<1x16x16x128xbf16>,
    %cst_16 = arith.constant dense<0.000000e+00> : vector<128xf32>
    %35 = vector.multi_reduction <add>, %29, %cst_16 [0] : vector<256x128xf32> to vector<128xf32>
    %36 = vector.shape_cast %35 : vector<128xf32> to vector<1x128xf32>
    %37 = arith.mulf %29, %29 : vector<256x128xf32>
    %cst_17 = arith.constant dense<0.000000e+00> : vector<128xf32>
    %38 = vector.multi_reduction <add>, %37, %cst_17 [0] : vector<256x128xf32> to vector<128xf32>
    %39 = vector.shape_cast %38 : vector<128xf32> to vector<1x128xf32>
    %40 = tpu.concatenate %36, %39 in 0 : vector<1x128xf32>, vector<1x128xf32> -> vector<2x128xf32>
    %c0_i32 = arith.constant 0 : i32
    %41 = arith.cmpi eq, %arg2, %c0_i32 : i32
    %42 = arith.extui %41 : i1 to i32
    %c0_i32_18 = arith.constant 0 : i32
    %43 = arith.cmpi ne, %42, %c0_i32_18 : i32
    scf.if %43 {
      %c0_21 = arith.constant 0 : index
      %c0_22 = arith.constant 0 : index
      %c0_23 = arith.constant 0 : index
      %47 = vector.load %arg6[%c0_21, %c0_22, %c0_23] : memref<1x2x128xf32, #tpu.memory_space<vmem>>, vector<1x2x128xf32>
      %48 = vector.shape_cast %47 : vector<1x2x128xf32> to vector<2x128xf32>
      %49 = vector.shape_cast %40 : vector<2x128xf32> to vector<1x2x128xf32>
      tpu.vector_store %arg6[%c0_21, %c0_22, %c0_23], %49 {strides = array<i32>} : memref<1x2x128xf32, #tpu.memory_space<vmem>>, vector<1x2x128xf32>,
    } else {
    }
    %c0_i32_19 = arith.constant 0 : i32
    %44 = arith.cmpi sgt, %arg2, %c0_i32_19 : i32
    %45 = arith.extui %44 : i1 to i32
    %c0_i32_20 = arith.constant 0 : i32
    %46 = arith.cmpi ne, %45, %c0_i32_20 : i32
    scf.if %46 {
      %c0_21 = arith.constant 0 : index
      %c0_22 = arith.constant 0 : index
      %c0_23 = arith.constant 0 : index
      %47 = vector.load %arg6[%c0_21, %c0_22, %c0_23] : memref<1x2x128xf32, #tpu.memory_space<vmem>>, vector<1x2x128xf32>
      %48 = vector.shape_cast %47 : vector<1x2x128xf32> to vector<2x128xf32>
      %49 = arith.addf %48, %40 : vector<2x128xf32>
      %c0_24 = arith.constant 0 : index
      %c0_25 = arith.constant 0 : index
      %c0_26 = arith.constant 0 : index
      %50 = vector.load %arg6[%c0_24, %c0_25, %c0_26] : memref<1x2x128xf32, #tpu.memory_space<vmem>>, vector<1x2x128xf32>
      %51 = vector.shape_cast %50 : vector<1x2x128xf32> to vector<2x128xf32>
      %52 = vector.shape_cast %49 : vector<2x128xf32> to vector<1x2x128xf32>
      tpu.vector_store %arg6[%c0_24, %c0_25, %c0_26], %52 {strides = array<i32>} : memref<1x2x128xf32, #tpu.memory_space<vmem>>, vector<1x2x128xf32>,
    } else {
    }
    return
  }
  func.func @transform_0(%arg0: i32, %arg1: i32, %arg2: i32) -> (i32, i32, i32, i32) {
    %c0_i32 = arith.constant 0 : i32
    %c0_i32_0 = arith.constant 0 : i32
    %c0_i32_1 = arith.constant 0 : i32
    %c0_i32_2 = arith.constant 0 : i32
    return %arg0, %c0_i32, %c0_i32_0, %c0_i32_1 : i32, i32, i32, i32
  }
  func.func @transform_1(%arg0: i32, %arg1: i32, %arg2: i32) -> (i32, i32, i32) {
    %c0_i32 = arith.constant 0 : i32
    %c0_i32_0 = arith.constant 0 : i32
    %c0_i32_1 = arith.constant 0 : i32
    return %c0_i32, %c0_i32_0, %arg1 : i32, i32, i32
  }
  func.func @transform_2(%arg0: i32, %arg1: i32, %arg2: i32) -> (i32, i32, i32, i32) {
    %c0_i32 = arith.constant 0 : i32
    %c0_i32_0 = arith.constant 0 : i32
    return %arg0, %arg2, %c0_i32, %arg1 : i32, i32, i32, i32
  }
  func.func @transform_3(%arg0: i32, %arg1: i32, %arg2: i32) -> (i32, i32, i32) {
    %c0_i32 = arith.constant 0 : i32
    %c0_i32_0 = arith.constant 0 : i32
    return %arg0, %c0_i32, %arg1 : i32, i32, i32
  }
}

module attributes {stable_mosaic.version = 11 : i64} {
  func.func @_bn_relu_kernel(%arg0: i32, %arg1: i32, %arg2: memref<1x16x16x128xbf16, #tpu.memory_space<vmem>>, %arg3: memref<1x128xf32, #tpu.memory_space<vmem>>, %arg4: memref<1x128xf32, #tpu.memory_space<vmem>>, %arg5: memref<1x16x16x128xf32, #tpu.memory_space<vmem>>) attributes {dimension_semantics = [#tpu.dimension_semantics<parallel>, #tpu.dimension_semantics<parallel>], iteration_bounds = array<i64: 2, 1>, scalar_prefetch = 0 : i64, scratch_operands = 0 : i64, tpu.core_type = #tpu.core_type<tc>, window_params = [{transform_indices = @transform_0, window_bounds = array<i64: 1, 16, 16, 128>}, {pipeline_mode = #tpu.pipeline_mode<synchronous>, transform_indices = @transform_1, window_bounds = array<i64: 1, 128>}, {pipeline_mode = #tpu.pipeline_mode<synchronous>, transform_indices = @transform_2, window_bounds = array<i64: 1, 128>}, {transform_indices = @transform_3, window_bounds = array<i64: 1, 16, 16, 128>}]} {
    %c0 = arith.constant 0 : index
    %c0_0 = arith.constant 0 : index
    %c0_1 = arith.constant 0 : index
    %c0_2 = arith.constant 0 : index
    %0 = vector.load %arg2[%c0, %c0_0, %c0_1, %c0_2] : memref<1x16x16x128xbf16, #tpu.memory_space<vmem>>, vector<1x16x16x128xbf16>
    %1 = vector.shape_cast %0 : vector<1x16x16x128xbf16> to vector<16x16x128xbf16>
    %2 = arith.extf %1 : vector<16x16x128xbf16> to vector<16x16x128xf32>
    %c0_3 = arith.constant 0 : index
    %c0_4 = arith.constant 0 : index
    %3 = vector.load %arg3[%c0_3, %c0_4] : memref<1x128xf32, #tpu.memory_space<vmem>>, vector<1x128xf32>
    %c0_5 = arith.constant 0 : index
    %c0_6 = arith.constant 0 : index
    %4 = vector.load %arg4[%c0_5, %c0_6] : memref<1x128xf32, #tpu.memory_space<vmem>>, vector<1x128xf32>
    %5 = vector.shape_cast %3 : vector<1x128xf32> to vector<1x1x128xf32>
    %6 = vector.broadcast %5 : vector<1x1x128xf32> to vector<16x16x128xf32>
    %7 = arith.mulf %2, %6 : vector<16x16x128xf32>
    %8 = vector.shape_cast %4 : vector<1x128xf32> to vector<1x1x128xf32>
    %9 = vector.broadcast %8 : vector<1x1x128xf32> to vector<16x16x128xf32>
    %10 = arith.addf %7, %9 : vector<16x16x128xf32>
    %cst = arith.constant 0.000000e+00 : f32
    %11 = vector.broadcast %cst : f32 to vector<16x16x128xf32>
    %12 = arith.maximumf %10, %11 : vector<16x16x128xf32>
    %c0_7 = arith.constant 0 : index
    %c0_8 = arith.constant 0 : index
    %c0_9 = arith.constant 0 : index
    %c0_10 = arith.constant 0 : index
    %13 = vector.load %arg5[%c0_7, %c0_8, %c0_9, %c0_10] : memref<1x16x16x128xf32, #tpu.memory_space<vmem>>, vector<1x16x16x128xf32>
    %14 = vector.shape_cast %13 : vector<1x16x16x128xf32> to vector<16x16x128xf32>
    %15 = vector.shape_cast %12 : vector<16x16x128xf32> to vector<1x16x16x128xf32>
    tpu.vector_store %arg5[%c0_7, %c0_8, %c0_9, %c0_10], %15 {strides = array<i32>} : memref<1x16x16x128xf32, #tpu.memory_space<vmem>>, vector<1x16x16x128xf32>,
    return
  }
  func.func @transform_0(%arg0: i32, %arg1: i32) -> (i32, i32, i32, i32) {
    %c0_i32 = arith.constant 0 : i32
    %c0_i32_0 = arith.constant 0 : i32
    %c0_i32_1 = arith.constant 0 : i32
    return %arg0, %arg1, %c0_i32, %c0_i32_0 : i32, i32, i32, i32
  }
  func.func @transform_1(%arg0: i32, %arg1: i32) -> (i32, i32) {
    %c0_i32 = arith.constant 0 : i32
    %c0_i32_0 = arith.constant 0 : i32
    %c0_i32_1 = arith.constant 0 : i32
    return %c0_i32, %c0_i32_0 : i32, i32
  }
  func.func @transform_2(%arg0: i32, %arg1: i32) -> (i32, i32) {
    %c0_i32 = arith.constant 0 : i32
    %c0_i32_0 = arith.constant 0 : i32
    %c0_i32_1 = arith.constant 0 : i32
    return %c0_i32, %c0_i32_0 : i32, i32
  }
  func.func @transform_3(%arg0: i32, %arg1: i32) -> (i32, i32, i32, i32) {
    %c0_i32 = arith.constant 0 : i32
    %c0_i32_0 = arith.constant 0 : i32
    %c0_i32_1 = arith.constant 0 : i32
    return %arg0, %arg1, %c0_i32, %c0_i32_0 : i32, i32, i32, i32
  }
}

</mosaic_0001>

<llo_original>
// kernel: _lambda_.3
$region0: #{_lambda_.3}
  #allocation0 [shape = 'u32[]', space=smem, size = 0x4, offset = 0x4, fixed_abs, tag = 'smem constant byte address 0x4 - core index']
  #allocation1 [shape = 'u32[72,128]{1,0:T(1,128)}', space=vmem, size = 0x9000, scoped, tag = 'internal scratch']
  %s0 = inlined_call_operand.vmem [shape: bf16[2,16,16,128], index: 0, kind: input, shape index: {}]
  %s1 = inlined_call_operand.vmem [shape: f32[1,128], index: 1, kind: input, shape index: {}]
  %s2 = inlined_call_operand.vmem [shape: f32[1,128], index: 2, kind: input, shape index: {}]
  %s3 = inlined_call_operand.hbm [shape: f32[2,16,16,128], index: 3, kind: output, shape index: {}]
  %s4 = sld [smem:[#allocation0]]
  $region45: #{_lambda_.3} parent=0
    _
  %s6 = ssub.s32 1, %s4
  %s7 = scalar_select 0, %s6, %s4
  $region1: #{_lambda_.3} parent=0
    #allocation2 [shape = 'u8[262144]{0}', space=vmem, size = 0x40000, scoped, tag = 'output window, operand 0']
    #allocation3 [shape = 's32[2]{0}', space=sflag, size = 0x8, scoped, tag = 'scoped memory for _lambda_.3']
    %8 = vsyncpa [#allocation3], 0
    %s9 = scalar_lea.sflag [#allocation3], 1
    %10 = vsyncpa %s9, 0
    loop: start=0, step=1, limit=4
    $region2: #{_lambda_.3} parent=1 // loop_pre_header
      _
    $region3: #{_lambda_.3} parent=1 // loop_header
      %s12 = sphi 0, %s16
      %p13 = scmp.ge.s32.totalorder %s12, 4
      %s19 = sphi 0, %s31
      %s20 = sphi 0, %s27
      %s21 = sphi 0, %s19
      %s22 = sphi 0, %s20
      %s23 = sphi 0, %s21
      %s24 = sphi 0, %s22
      %s36 = sphi 0, %s38
      %s39 = sphi 0, %s36
      %s40 = sphi 0, %s39
      %s56 = sphi 0, %s40
      %s60 = sphi 0, %s60
      %s62 = sphi 0, %s60
      %s63 = sphi 0, %s62
      %s77 = sphi 0, %s63
      %s81 = sphi 0, %s81
      %s83 = sphi 0, %s81
      %s84 = sphi 0, %s83
      %s98 = sphi 0, %s84
      %s106 = sphi 0, %s108
      %s109 = sphi 0, %s106
      %s110 = sphi 0, %s109
      %s126 = sphi 0, %s110
    $region4: #{_lambda_.3} parent=1 // loop_header_branch
      %15 = sbr.rel (%p13) target = $region8
    $region5: #{_lambda_.3} parent=1 // loop_body
      %s17 = ssub.s32 %s12, 1
      %s18 = ssub.s32 %s12, 2
      %s25 = sadd.s32 1, %s20
      %p26 = scmp.ge.s32.totalorder %s25, 1
      %s27 = scalar_select %p26, 0, %s25
      %s28 = sadd.s32 1, %s19
      %s29 = scalar_select %p26, %s28, %s19
      %p30 = scmp.ge.s32.totalorder %s29, 2
      %s31 = scalar_select %p30, 0, %s29
      %s32 = ssub.s32 %s19, %s31
      %s33 = ssub.s32 %s20, %s27
      %s34 = sor.u32 %s32, %s33
      %p35 = scmp.eq.s32.totalorder %s34, 0
      %s37 = sadd.s32 %s36, 1
      %s38 = scalar_select %p35, %s36, %s37
      %p41 = pneg %p35
      %p42 = scmp.eq.s32.totalorder %s12, 1
      %p43 = por %p41, %p42
      %p44 = scmp.ne.s32.totalorder %s36, %s39
      %p45 = scmp.eq.s32.totalorder %s12, 0
      %p46 = por %p44, %p45
      %p47 = scmp.ne.s32.totalorder %s36, %s39
      %p48 = scmp.eq.s32.totalorder %s17, 1
      %p49 = por %p47, %p48
      %p50 = scmp.ne.s32.totalorder %s39, %s40
      %p51 = scmp.eq.s32.totalorder %s17, 0
      %p52 = por %p50, %p51
      %p53 = scmp.ne.s32.totalorder %s39, %s40
      %p54 = scmp.eq.s32.totalorder %s18, 1
      %p55 = por %p53, %p54
      %p57 = scmp.ne.s32.totalorder %s40, %s56
      %p58 = scmp.eq.s32.totalorder %s18, 0
      %p59 = por %p57, %p58
      %s61 = sadd.s32 %s60, 1
      %p64 = scmp.eq.s32.totalorder %s12, 1
      %p65 = scmp.ne.s32.totalorder %s60, %s62
      %p66 = scmp.eq.s32.totalorder %s12, 0
      %p67 = por %p65, %p66
      %p68 = scmp.ne.s32.totalorder %s60, %s62
      %p69 = scmp.eq.s32.totalorder %s17, 1
      %p70 = por %p68, %p69
      %p71 = scmp.ne.s32.totalorder %s62, %s63
      %p72 = scmp.eq.s32.totalorder %s17, 0
      %p73 = por %p71, %p72
      %p74 = scmp.ne.s32.totalorder %s62, %s63
      %p75 = scmp.eq.s32.totalorder %s18, 1
      %p76 = por %p74, %p75
      %p78 = scmp.ne.s32.totalorder %s63, %s77
      %p79 = scmp.eq.s32.totalorder %s18, 0
      %p80 = por %p78, %p79
      %s82 = sadd.s32 %s81, 1
      %p85 = scmp.eq.s32.totalorder %s12, 1
      %p86 = scmp.ne.s32.totalorder %s81, %s83
      %p87 = scmp.eq.s32.totalorder %s12, 0
      %p88 = por %p86, %p87
      %p89 = scmp.ne.s32.totalorder %s81, %s83
      %p90 = scmp.eq.s32.totalorder %s17, 1
      %p91 = por %p89, %p90
      %p92 = scmp.ne.s32.totalorder %s83, %s84
      %p93 = scmp.eq.s32.totalorder %s17, 0
      %p94 = por %p92, %p93
      %p95 = scmp.ne.s32.totalorder %s83, %s84
      %p96 = scmp.eq.s32.totalorder %s18, 1
      %p97 = por %p95, %p96
      %p99 = scmp.ne.s32.totalorder %s84, %s98
      %p100 = scmp.eq.s32.totalorder %s18, 0
      %p101 = por %p99, %p100
      %s102 = ssub.s32 %s19, %s31
      %s103 = ssub.s32 %s20, %s27
      %s104 = sor.u32 %s102, %s103
      %p105 = scmp.eq.s32.totalorder %s104, 0
      %s107 = sadd.s32 %s106, 1
      %s108 = scalar_select %p105, %s106, %s107
      %p111 = pneg %p105
      %p112 = scmp.eq.s32.totalorder %s12, 1
      %p113 = por %p111, %p112
      %p114 = scmp.ne.s32.totalorder %s106, %s109
      %p115 = scmp.eq.s32.totalorder %s12, 0
      %p116 = por %p114, %p115
      %p117 = scmp.ne.s32.totalorder %s106, %s109
      %p118 = scmp.eq.s32.totalorder %s17, 1
      %p119 = por %p117, %p118
      %p120 = scmp.ne.s32.totalorder %s109, %s110
      %p121 = scmp.eq.s32.totalorder %s17, 0
      %p122 = por %p120, %p121
      %p123 = scmp.ne.s32.totalorder %s109, %s110
      %p124 = scmp.eq.s32.totalorder %s18, 1
      %p125 = por %p123, %p124
      %p127 = scmp.ne.s32.totalorder %s110, %s126
      %p128 = scmp.eq.s32.totalorder %s18, 0
      %p129 = por %p127, %p128
      %p130 = scmp.le.s32.totalorder 1, %s12
      %p131 = scmp.lt.s32.totalorder %s12, 3
      %p132 = pnand %p130, %p131
      %p133 = pneg %p132
      // Predicated region
      $region9: #{_lambda_.3} parent=5 // pred_check
        _
      $region10: #{_lambda_.3} parent=5 // pred_check_branch
        %135 = sbr.rel (%p132) target = $region12
      $region11: #{_lambda_.3} parent=5 // pred_region
        %s136 = ssub.s32 %s12, 1
        // Predicated region
        $region13: #{_lambda_.3} parent=11 // pred_check
          %p137 = pneg %p73
        $region14: #{_lambda_.3} parent=11 // pred_check_branch
          %139 = sbr.rel (%p137) target = $region16
        $region15: #{_lambda_.3} parent=11 // pred_region
          _
        $region16: #{_lambda_.3} parent=11 // pred_fallthru
          _
        // Predicated region
        $region17: #{_lambda_.3} parent=11 // pred_check
          %p140 = pneg %p94
        $region18: #{_lambda_.3} parent=11 // pred_check_branch
          %142 = sbr.rel (%p140) target = $region20
        $region19: #{_lambda_.3} parent=11 // pred_region
          _
        $region20: #{_lambda_.3} parent=11 // pred_fallthru
          _
      $region12: #{_lambda_.3} parent=5 // pred_fallthru
        _
      %p143 = scmp.lt.s32.totalorder %s12, 2
      // Predicated region
      $region21: #{_lambda_.3} parent=5 // pred_check
        %p144 = pneg %p143
      $region22: #{_lambda_.3} parent=5 // pred_check_branch
        %146 = sbr.rel (%p144) target = $region24
      $region23: #{_lambda_.3} parent=5 // pred_region
        // Predicated region
        $region25: #{_lambda_.3} parent=23 // pred_check
          %p147 = pneg %p46
        $region26: #{_lambda_.3} parent=23 // pred_check_branch
          %149 = sbr.rel (%p147) target = $region28
        $region27: #{_lambda_.3} parent=23 // pred_region
          %s150 = smul.u32 16, %s20
          %p151 = scmp.lt.s32.totalorder %s19, 1
          %s152 = scalar_select %p151, %s19, 1
          %p153 = scmp.lt.s32.totalorder %s150, 15
          %s154 = scalar_select %p153, %s150, 15
          %s155 = smul.addr %s154, 2
          %s156 = smul.addr %s152, 32
          %s157 = sadd.s32 %s155, %s156
          %s158 = smul.addr %s157, 4
          %s159 = scalar_lea.vmem %s0, %s158
          %s160 = smul.u32 16, %s20
        $region28: #{_lambda_.3} parent=23 // pred_fallthru
          _
      $region24: #{_lambda_.3} parent=5 // pred_fallthru
        _
      %p161 = scmp.le.s32.totalorder 1, %s12
      %p162 = scmp.lt.s32.totalorder %s12, 3
      %p163 = pnand %p161, %p162
      %p164 = pneg %p163
      // Predicated region
      $region29: #{_lambda_.3} parent=5 // pred_check
        _
      $region30: #{_lambda_.3} parent=5 // pred_check_branch
        %166 = sbr.rel (%p163) target = $region32
      $region31: #{_lambda_.3} parent=5 // pred_region
        %s167 = ssub.s32 %s12, 1
        %s168 = smul.u32 16, %s22
        %p169 = scmp.lt.s32.totalorder %s21, 1
        %s170 = scalar_select %p169, %s21, 1
        %p171 = scmp.lt.s32.totalorder %s168, 15
        %s172 = scalar_select %p171, %s168, 15
        %s173 = smul.addr %s172, 2
        %s174 = smul.addr %s170, 32
        %s175 = sadd.s32 %s173, %s174
        %s176 = smul.addr %s175, 4
        %s177 = scalar_lea.vmem %s0, %s176
        %p178 = pneg %p52
        %p179 = pneg %p49
        %p180 = pneg %p73
        %p181 = pneg %p70
        %p182 = pneg %p94
        %p183 = pneg %p91
        %p184 = pneg %p122
        %p185 = pneg %p119
        %s186 = sand.u32 %s109, 1
        %s187 = scalar_lea.sflag [#allocation3], %s186
        %s188 = sand.u32 %s109, 1
        %s189 = smul.addr %s188, 256
        %s190 = scalar_lea.vmem [#allocation2], %s189
        %s191 = smul.u32 16, %s22
        %p192 = scmp.lt.s32.totalorder %s21, 1
        %s193 = scalar_select %p192, %s21, 1
        %p194 = scmp.lt.s32.totalorder %s191, 15
        %s195 = scalar_select %p194, %s191, 15
        %s196 = smul.addr %s195, 2
        %s197 = smul.addr %s193, 32
        %s198 = sadd.s32 %s196, %s197
        %s199 = smul.addr %s198, 4
        %s200 = scalar_lea.vmem %s0, %s199
        %s201 = smul.u32 16, %s22
        %s202 = smul.u32 16, %s22
        %v203 = vld [vmem:[%s200] sm:$0xf]
        %v204 = vld [vmem:[%s200 + $0x4] sm:$0xf]
        %v205 = vld [vmem:[%s200 + $0x8] sm:$0xf]
        %v206 = vld [vmem:[%s200 + $0xc] sm:$0xf]
        %v207 = vld [vmem:[%s200 + $0x10] sm:$0xf]
        %v208 = vld [vmem:[%s200 + $0x14] sm:$0xf]
        %v209 = vld [vmem:[%s200 + $0x18] sm:$0xf]
        %v210 = vld [vmem:[%s200 + $0x1c] sm:$0xf]
        %v211 = vld [vmem:[%s200 + $0x20] sm:$0xf]
        %v212 = vld [vmem:[%s200 + $0x24] sm:$0xf]
        %v213 = vld [vmem:[%s200 + $0x28] sm:$0xf]
        %v214 = vld [vmem:[%s200 + $0x2c] sm:$0xf]
        %v215 = vld [vmem:[%s200 + $0x30] sm:$0xf]
        %v216 = vld [vmem:[%s200 + $0x34] sm:$0xf]
        %v217 = vld [vmem:[%s200 + $0x38] sm:$0xf]
        %v218 = vld [vmem:[%s200 + $0x3c] sm:$0xf]
        %v219 = vld [vmem:[%s200 + $0x40] sm:$0xf]
        %v220 = vld [vmem:[%s200 + $0x44] sm:$0xf]
        %v221 = vld [vmem:[%s200 + $0x48] sm:$0xf]
        %v222 = vld [vmem:[%s200 + $0x4c] sm:$0xf]
        %v223 = vld [vmem:[%s200 + $0x50] sm:$0xf]
        %v224 = vld [vmem:[%s200 + $0x54] sm:$0xf]
        %v225 = vld [vmem:[%s200 + $0x58] sm:$0xf]
        %v226 = vld [vmem:[%s200 + $0x5c] sm:$0xf]
        %v227 = vld [vmem:[%s200 + $0x60] sm:$0xf]
        %v228 = vld [vmem:[%s200 + $0x64] sm:$0xf]
        %v229 = vld [vmem:[%s200 + $0x68] sm:$0xf]
        %v230 = vld [vmem:[%s200 + $0x6c] sm:$0xf]
        %v231 = vld [vmem:[%s200 + $0x70] sm:$0xf]
        %v232 = vld [vmem:[%s200 + $0x74] sm:$0xf]
        %v233 = vld [vmem:[%s200 + $0x78] sm:$0xf]
        %v234 = vld [vmem:[%s200 + $0x7c] sm:$0xf]
        %v235 = vunpack.c.l.bf16 %v203
        %v236 = vunpack.c.l.bf16 %v204
        %v237 = vunpack.c.l.bf16 %v205
        %v238 = vunpack.c.l.bf16 %v206
        %v239 = vunpack.c.l.bf16 %v207
        %v240 = vunpack.c.l.bf16 %v208
        %v241 = vunpack.c.l.bf16 %v209
        %v242 = vunpack.c.l.bf16 %v210
        %v243 = vunpack.c.l.bf16 %v211
        %v244 = vunpack.c.l.bf16 %v212
        %v245 = vunpack.c.l.bf16 %v213
        %v246 = vunpack.c.l.bf16 %v214
        %v247 = vunpack.c.l.bf16 %v215
        %v248 = vunpack.c.l.bf16 %v216
        %v249 = vunpack.c.l.bf16 %v217
        %v250 = vunpack.c.l.bf16 %v218
        %v251 = vunpack.c.l.bf16 %v219
        %v252 = vunpack.c.l.bf16 %v220
        %v253 = vunpack.c.l.bf16 %v221
        %v254 = vunpack.c.l.bf16 %v222
        %v255 = vunpack.c.l.bf16 %v223
        %v256 = vunpack.c.l.bf16 %v224
        %v257 = vunpack.c.l.bf16 %v225
        %v258 = vunpack.c.l.bf16 %v226
        %v259 = vunpack.c.l.bf16 %v227
        %v260 = vunpack.c.l.bf16 %v228
        %v261 = vunpack.c.l.bf16 %v229
        %v262 = vunpack.c.l.bf16 %v230
        %v263 = vunpack.c.l.bf16 %v231
        %v264 = vunpack.c.l.bf16 %v232
        %v265 = vunpack.c.l.bf16 %v233
        %v266 = vunpack.c.l.bf16 %v234
        %v267 = vld [vmem:[%s1] sm:$0x1]
        %v268 = vld [vmem:[%s2] sm:$0x1]
        %v270 = vperm.slane %v267, 0
        %v272 = vmul.f32 %v235, %v270
        %v273 = vmul.f32 %v236, %v270
        %v274 = vmul.f32 %v237, %v270
        %v275 = vmul.f32 %v238, %v270
        %v276 = vmul.f32 %v239, %v270
        %v277 = vmul.f32 %v240, %v270
        %v278 = vmul.f32 %v241, %v270
        %v279 = vmul.f32 %v242, %v270
        %v280 = vmul.f32 %v243, %v270
        %v281 = vmul.f32 %v244, %v270
        %v282 = vmul.f32 %v245, %v270
        %v283 = vmul.f32 %v246, %v270
        %v284 = vmul.f32 %v247, %v270
        %v285 = vmul.f32 %v248, %v270
        %v286 = vmul.f32 %v249, %v270
        %v287 = vmul.f32 %v250, %v270
        %v288 = vmul.f32 %v251, %v270
        %v289 = vmul.f32 %v252, %v270
        %v290 = vmul.f32 %v253, %v270
        %v291 = vmul.f32 %v254, %v270
        %v292 = vmul.f32 %v255, %v270
        %v293 = vmul.f32 %v256, %v270
        %v294 = vmul.f32 %v257, %v270
        %v295 = vmul.f32 %v258, %v270
        %v296 = vmul.f32 %v259, %v270
        %v297 = vmul.f32 %v260, %v270
        %v298 = vmul.f32 %v261, %v270
        %v299 = vmul.f32 %v262, %v270
        %v300 = vmul.f32 %v263, %v270
        %v301 = vmul.f32 %v264, %v270
        %v302 = vmul.f32 %v265, %v270
        %v303 = vmul.f32 %v266, %v270
        %v305 = vperm.slane %v268, 0
        %v307 = vadd.f32 %v272, %v305
        %v308 = vadd.f32 %v273, %v305
        %v309 = vadd.f32 %v274, %v305
        %v310 = vadd.f32 %v275, %v305
        %v311 = vadd.f32 %v276, %v305
        %v312 = vadd.f32 %v277, %v305
        %v313 = vadd.f32 %v278, %v305
        %v314 = vadd.f32 %v279, %v305
        %v315 = vadd.f32 %v280, %v305
        %v316 = vadd.f32 %v281, %v305
        %v317 = vadd.f32 %v282, %v305
        %v318 = vadd.f32 %v283, %v305
        %v319 = vadd.f32 %v284, %v305
        %v320 = vadd.f32 %v285, %v305
        %v321 = vadd.f32 %v286, %v305
        %v322 = vadd.f32 %v287, %v305
        %v323 = vadd.f32 %v288, %v305
        %v324 = vadd.f32 %v289, %v305
        %v325 = vadd.f32 %v290, %v305
        %v326 = vadd.f32 %v291, %v305
        %v327 = vadd.f32 %v292, %v305
        %v328 = vadd.f32 %v293, %v305
        %v329 = vadd.f32 %v294, %v305
        %v330 = vadd.f32 %v295, %v305
        %v331 = vadd.f32 %v296, %v305
        %v332 = vadd.f32 %v297, %v305
        %v333 = vadd.f32 %v298, %v305
        %v334 = vadd.f32 %v299, %v305
        %v335 = vadd.f32 %v300, %v305
        %v336 = vadd.f32 %v301, %v305
        %v337 = vadd.f32 %v302, %v305
        %v338 = vadd.f32 %v303, %v305
        %v339 = vmax.f32 %v307, 0.0
        %v340 = vmax.f32 %v308, 0.0
        %v341 = vmax.f32 %v309, 0.0
        %v342 = vmax.f32 %v310, 0.0
        %v343 = vmax.f32 %v311, 0.0
        %v344 = vmax.f32 %v312, 0.0
        %v345 = vmax.f32 %v313, 0.0
        %v346 = vmax.f32 %v314, 0.0
        %v347 = vmax.f32 %v315, 0.0
        %v348 = vmax.f32 %v316, 0.0
        %v349 = vmax.f32 %v317, 0.0
        %v350 = vmax.f32 %v318, 0.0
        %v351 = vmax.f32 %v319, 0.0
        %v352 = vmax.f32 %v320, 0.0
        %v353 = vmax.f32 %v321, 0.0
        %v354 = vmax.f32 %v322, 0.0
        %v355 = vmax.f32 %v323, 0.0
        %v356 = vmax.f32 %v324, 0.0
        %v357 = vmax.f32 %v325, 0.0
        %v358 = vmax.f32 %v326, 0.0
        %v359 = vmax.f32 %v327, 0.0
        %v360 = vmax.f32 %v328, 0.0
        %v361 = vmax.f32 %v329, 0.0
        %v362 = vmax.f32 %v330, 0.0
        %v363 = vmax.f32 %v331, 0.0
        %v364 = vmax.f32 %v332, 0.0
        %v365 = vmax.f32 %v333, 0.0
        %v366 = vmax.f32 %v334, 0.0
        %v367 = vmax.f32 %v335, 0.0
        %v368 = vmax.f32 %v336, 0.0
        %v369 = vmax.f32 %v337, 0.0
        %v370 = vmax.f32 %v338, 0.0
        %371 = vst [vmem:[%s190] sm:$0xff] %v339
        %372 = vst [vmem:[%s190 + $0x8] sm:$0xff] %v340
        %373 = vst [vmem:[%s190 + $0x10] sm:$0xff] %v341
        %374 = vst [vmem:[%s190 + $0x18] sm:$0xff] %v342
        %375 = vst [vmem:[%s190 + $0x20] sm:$0xff] %v343
        %376 = vst [vmem:[%s190 + $0x28] sm:$0xff] %v344
        %377 = vst [vmem:[%s190 + $0x30] sm:$0xff] %v345
        %378 = vst [vmem:[%s190 + $0x38] sm:$0xff] %v346
        %379 = vst [vmem:[%s190 + $0x40] sm:$0xff] %v347
        %380 = vst [vmem:[%s190 + $0x48] sm:$0xff] %v348
        %381 = vst [vmem:[%s190 + $0x50] sm:$0xff] %v349
        %382 = vst [vmem:[%s190 + $0x58] sm:$0xff] %v350
        %383 = vst [vmem:[%s190 + $0x60] sm:$0xff] %v351
        %384 = vst [vmem:[%s190 + $0x68] sm:$0xff] %v352
        %385 = vst [vmem:[%s190 + $0x70] sm:$0xff] %v353
        %386 = vst [vmem:[%s190 + $0x78] sm:$0xff] %v354
        %387 = vst [vmem:[%s190 + $0x80] sm:$0xff] %v355
        %388 = vst [vmem:[%s190 + $0x88] sm:$0xff] %v356
        %389 = vst [vmem:[%s190 + $0x90] sm:$0xff] %v357
        %390 = vst [vmem:[%s190 + $0x98] sm:$0xff] %v358
        %391 = vst [vmem:[%s190 + $0xa0] sm:$0xff] %v359
        %392 = vst [vmem:[%s190 + $0xa8] sm:$0xff] %v360
        %393 = vst [vmem:[%s190 + $0xb0] sm:$0xff] %v361
        %394 = vst [vmem:[%s190 + $0xb8] sm:$0xff] %v362
        %395 = vst [vmem:[%s190 + $0xc0] sm:$0xff] %v363
        %396 = vst [vmem:[%s190 + $0xc8] sm:$0xff] %v364
        %397 = vst [vmem:[%s190 + $0xd0] sm:$0xff] %v365
        %398 = vst [vmem:[%s190 + $0xd8] sm:$0xff] %v366
        %399 = vst [vmem:[%s190 + $0xe0] sm:$0xff] %v367
        %400 = vst [vmem:[%s190 + $0xe8] sm:$0xff] %v368
        %401 = vst [vmem:[%s190 + $0xf0] sm:$0xff] %v369
        %402 = vst [vmem:[%s190 + $0xf8] sm:$0xff] %v370
        %s403 = sand.u32 %s109, 1
        %s404 = scalar_lea.sflag [#allocation3], %s403
        %s405 = sand.u32 %s109, 1
        %s406 = smul.addr %s405, 256
        %s407 = scalar_lea.vmem [#allocation2], %s406
        // Predicated region
        $region33: #{_lambda_.3} parent=31 // pred_check
          %p408 = pneg %p119
        $region34: #{_lambda_.3} parent=31 // pred_check_branch
          %410 = sbr.rel (%p408) target = $region36
        $region35: #{_lambda_.3} parent=31 // pred_region
          %s411 = smul.u32 16, %s22
          %413 = vsyncadd %s404, 0
          %s414 = smul.addr %s411, 2
          %s415 = smul.addr %s21, 32
          %s416 = sadd.s32 %s414, %s415
          %s417 = smul.addr %s416, 8
          %s418 = scalar_lea.hbm %s3, %s417
          %s419 = sshll.u32 %s407, 4
          %s420 = int_to_ptr.vmem [resolvable:$true] %s419
          %s421 = sshll.u32 %s418, 4
          %s422 = int_to_ptr.hbm [resolvable:$true] %s421
          %427 = dma.vmem_to_hbm [thread:$0]  %s420, 4096, %s422, %s404, 128, 128, 8
        $region36: #{_lambda_.3} parent=31 // pred_fallthru
          _
      $region32: #{_lambda_.3} parent=5 // pred_fallthru
        _
      %p428 = scmp.le.s32.totalorder 2, %s12
      // Predicated region
      $region37: #{_lambda_.3} parent=5 // pred_check
        %p429 = pneg %p428
      $region38: #{_lambda_.3} parent=5 // pred_check_branch
        %431 = sbr.rel (%p429) target = $region40
      $region39: #{_lambda_.3} parent=5 // pred_region
        %s432 = ssub.s32 %s12, 2
        // Predicated region
        $region41: #{_lambda_.3} parent=39 // pred_check
          %p433 = pneg %p125
        $region42: #{_lambda_.3} parent=39 // pred_check_branch
          %435 = sbr.rel (%p433) target = $region44
        $region43: #{_lambda_.3} parent=39 // pred_region
          %s436 = sand.u32 %s110, 1
          %s437 = scalar_lea.sflag [#allocation3], %s436
          %s438 = sand.u32 %s110, 1
          %s439 = smul.addr %s438, 256
          %s440 = scalar_lea.vmem [#allocation2], %s439
          %442 = dma.done %s437, 4096
        $region44: #{_lambda_.3} parent=39 // pred_fallthru
          _
      $region40: #{_lambda_.3} parent=5 // pred_fallthru
        _
    $region6: #{_lambda_.3} parent=1 // loop_footer
      %s16 = sadd.s32 1, %s12
    $region7: #{_lambda_.3} parent=1 // loop_footer_branch
      %11 = sbr.rel target = $region3
    $region8: #{_lambda_.3} parent=1 // loop_exit
      _
    %443 = vsyncpa [#allocation3], 1
    %s444 = scalar_lea.sflag [#allocation3], 1
    %445 = vsyncpa %s444, 1

// kernel: _lambda_.2
$region0: #{_lambda_.2}
  #allocation0 [shape = 'u32[]', space=smem, size = 0x4, offset = 0x4, fixed_abs, tag = 'smem constant byte address 0x4 - core index']
  #allocation1 [shape = 'u32[72,128]{1,0:T(1,128)}', space=vmem, size = 0x9000, scoped, tag = 'internal scratch']
  %s0 = inlined_call_operand.vmem [shape: f32[2,18,24,32], index: 0, kind: input, shape index: {}]
  %s1 = inlined_call_operand.vmem [shape: bf16[3,96,128], index: 1, kind: input, shape index: {}]
  %s2 = inlined_call_operand.vmem [shape: bf16[2,16,16,128], index: 2, kind: output, shape index: {0}]
  %s3 = inlined_call_operand.vmem [shape: f32[2,2,128], index: 3, kind: output, shape index: {1}]
  %4 = xla_tuple %s2, %s3
  %s5 = sld [smem:[#allocation0]]
  $region57: #{_lambda_.2} parent=0
    _
  %s7 = ssub.s32 1, %s5
  %s8 = scalar_select 0, %s7, %s5
  loop: start=0, step=1, limit=4
  $region2: #{_lambda_.2} parent=0 // loop_pre_header
    _
  $region3: #{_lambda_.2} parent=0 // loop_header
    %s10 = sphi 0, %s14
    %p11 = scmp.ge.s32.totalorder %s10, 4
    %s17 = sphi 0, %s36
    %s18 = sphi 0, %s32
    %s19 = sphi 0, %s28
    %s20 = sphi 0, %s17
    %s21 = sphi 0, %s18
    %s22 = sphi 0, %s19
    %s23 = sphi 0, %s20
    %s24 = sphi 0, %s21
    %s25 = sphi 0, %s22
    %s39 = sphi 0, %s41
    %s42 = sphi 0, %s39
    %s43 = sphi 0, %s42
    %s59 = sphi 0, %s43
    %s65 = sphi 0, %s67
    %s68 = sphi 0, %s65
    %s69 = sphi 0, %s68
    %s85 = sphi 0, %s69
    %s95 = sphi 0, %s97
    %s98 = sphi 0, %s95
    %s99 = sphi 0, %s98
    %s115 = sphi 0, %s99
    %s123 = sphi 0, %s125
    %s126 = sphi 0, %s123
    %s127 = sphi 0, %s126
    %s143 = sphi 0, %s127
  $region4: #{_lambda_.2} parent=0 // loop_header_branch
    %13 = sbr.rel (%p11) target = $region8
  $region5: #{_lambda_.2} parent=0 // loop_body
    %s15 = ssub.s32 %s10, 1
    %s16 = ssub.s32 %s10, 2
    %s26 = sadd.s32 1, %s19
    %p27 = scmp.ge.s32.totalorder %s26, 1
    %s28 = scalar_select %p27, 0, %s26
    %s29 = sadd.s32 1, %s18
    %s30 = scalar_select %p27, %s29, %s18
    %p31 = scmp.ge.s32.totalorder %s30, 1
    %s32 = scalar_select %p31, 0, %s30
    %s33 = sadd.s32 1, %s17
    %s34 = scalar_select %p31, %s33, %s17
    %p35 = scmp.ge.s32.totalorder %s34, 2
    %s36 = scalar_select %p35, 0, %s34
    %s37 = ssub.s32 %s17, %s36
    %p38 = scmp.eq.s32.totalorder %s37, 0
    %s40 = sadd.s32 %s39, 1
    %s41 = scalar_select %p38, %s39, %s40
    %p44 = pneg %p38
    %p45 = scmp.eq.s32.totalorder %s10, 1
    %p46 = por %p44, %p45
    %p47 = scmp.ne.s32.totalorder %s39, %s42
    %p48 = scmp.eq.s32.totalorder %s10, 0
    %p49 = por %p47, %p48
    %p50 = scmp.ne.s32.totalorder %s39, %s42
    %p51 = scmp.eq.s32.totalorder %s15, 1
    %p52 = por %p50, %p51
    %p53 = scmp.ne.s32.totalorder %s42, %s43
    %p54 = scmp.eq.s32.totalorder %s15, 0
    %p55 = por %p53, %p54
    %p56 = scmp.ne.s32.totalorder %s42, %s43
    %p57 = scmp.eq.s32.totalorder %s16, 1
    %p58 = por %p56, %p57
    %p60 = scmp.ne.s32.totalorder %s43, %s59
    %p61 = scmp.eq.s32.totalorder %s16, 0
    %p62 = por %p60, %p61
    %s63 = ssub.s32 %s18, %s32
    %p64 = scmp.eq.s32.totalorder %s63, 0
    %s66 = sadd.s32 %s65, 1
    %s67 = scalar_select %p64, %s65, %s66
    %p70 = pneg %p64
    %p71 = scmp.eq.s32.totalorder %s10, 1
    %p72 = por %p70, %p71
    %p73 = scmp.ne.s32.totalorder %s65, %s68
    %p74 = scmp.eq.s32.totalorder %s10, 0
    %p75 = por %p73, %p74
    %p76 = scmp.ne.s32.totalorder %s65, %s68
    %p77 = scmp.eq.s32.totalorder %s15, 1
    %p78 = por %p76, %p77
    %p79 = scmp.ne.s32.totalorder %s68, %s69
    %p80 = scmp.eq.s32.totalorder %s15, 0
    %p81 = por %p79, %p80
    %p82 = scmp.ne.s32.totalorder %s68, %s69
    %p83 = scmp.eq.s32.totalorder %s16, 1
    %p84 = por %p82, %p83
    %p86 = scmp.ne.s32.totalorder %s69, %s85
    %p87 = scmp.eq.s32.totalorder %s16, 0
    %p88 = por %p86, %p87
    %s89 = ssub.s32 %s17, %s36
    %s90 = ssub.s32 %s19, %s28
    %s91 = sor.u32 %s89, %s90
    %s92 = ssub.s32 %s18, %s32
    %s93 = sor.u32 %s91, %s92
    %p94 = scmp.eq.s32.totalorder %s93, 0
    %s96 = sadd.s32 %s95, 1
    %s97 = scalar_select %p94, %s95, %s96
    %p100 = pneg %p94
    %p101 = scmp.eq.s32.totalorder %s10, 1
    %p102 = por %p100, %p101
    %p103 = scmp.ne.s32.totalorder %s95, %s98
    %p104 = scmp.eq.s32.totalorder %s10, 0
    %p105 = por %p103, %p104
    %p106 = scmp.ne.s32.totalorder %s95, %s98
    %p107 = scmp.eq.s32.totalorder %s15, 1
    %p108 = por %p106, %p107
    %p109 = scmp.ne.s32.totalorder %s98, %s99
    %p110 = scmp.eq.s32.totalorder %s15, 0
    %p111 = por %p109, %p110
    %p112 = scmp.ne.s32.totalorder %s98, %s99
    %p113 = scmp.eq.s32.totalorder %s16, 1
    %p114 = por %p112, %p113
    %p116 = scmp.ne.s32.totalorder %s99, %s115
    %p117 = scmp.eq.s32.totalorder %s16, 0
    %p118 = por %p116, %p117
    %s119 = ssub.s32 %s17, %s36
    %s120 = ssub.s32 %s18, %s32
    %s121 = sor.u32 %s119, %s120
    %p122 = scmp.eq.s32.totalorder %s121, 0
    %s124 = sadd.s32 %s123, 1
    %s125 = scalar_select %p122, %s123, %s124
    %p128 = pneg %p122
    %p129 = scmp.eq.s32.totalorder %s10, 1
    %p130 = por %p128, %p129
    %p131 = scmp.ne.s32.totalorder %s123, %s126
    %p132 = scmp.eq.s32.totalorder %s10, 0
    %p133 = por %p131, %p132
    %p134 = scmp.ne.s32.totalorder %s123, %s126
    %p135 = scmp.eq.s32.totalorder %s15, 1
    %p136 = por %p134, %p135
    %p137 = scmp.ne.s32.totalorder %s126, %s127
    %p138 = scmp.eq.s32.totalorder %s15, 0
    %p139 = por %p137, %p138
    %p140 = scmp.ne.s32.totalorder %s126, %s127
    %p141 = scmp.eq.s32.totalorder %s16, 1
    %p142 = por %p140, %p141
    %p144 = scmp.ne.s32.totalorder %s127, %s143
    %p145 = scmp.eq.s32.totalorder %s16, 0
    %p146 = por %p144, %p145
    %p147 = scmp.le.s32.totalorder 1, %s10
    %p148 = scmp.lt.s32.totalorder %s10, 3
    %p149 = pnand %p147, %p148
    %p150 = pneg %p149
    // Predicated region
    $region9: #{_lambda_.2} parent=5 // pred_check
      _
    $region10: #{_lambda_.2} parent=5 // pred_check_branch
      %152 = sbr.rel (%p149) target = $region12
    $region11: #{_lambda_.2} parent=5 // pred_region
      %s153 = ssub.s32 %s10, 1
      // Predicated region
      $region13: #{_lambda_.2} parent=11 // pred_check
        %p154 = pneg %p81
      $region14: #{_lambda_.2} parent=11 // pred_check_branch
        %156 = sbr.rel (%p154) target = $region16
      $region15: #{_lambda_.2} parent=11 // pred_region
        %p157 = scmp.lt.s32.totalorder %s21, 0
        %s158 = scalar_select %p157, %s21, 0
        %s159 = smul.addr %s158, 4
        %s160 = scalar_lea.vmem %s1, %s159
      $region16: #{_lambda_.2} parent=11 // pred_fallthru
        _
    $region12: #{_lambda_.2} parent=5 // pred_fallthru
      _
    %p161 = scmp.lt.s32.totalorder %s10, 2
    // Predicated region
    $region17: #{_lambda_.2} parent=5 // pred_check
      %p162 = pneg %p161
    $region18: #{_lambda_.2} parent=5 // pred_check_branch
      %164 = sbr.rel (%p162) target = $region20
    $region19: #{_lambda_.2} parent=5 // pred_region
      // Predicated region
      $region21: #{_lambda_.2} parent=19 // pred_check
        %p165 = pneg %p49
      $region22: #{_lambda_.2} parent=19 // pred_check_branch
        %167 = sbr.rel (%p165) target = $region24
      $region23: #{_lambda_.2} parent=19 // pred_region
        %p168 = scmp.lt.s32.totalorder %s17, 1
        %s169 = scalar_select %p168, %s17, 1
        %s170 = smul.addr %s169, 54
        %s171 = smul.addr %s170, 8
        %s172 = scalar_lea.vmem %s0, %s171
      $region24: #{_lambda_.2} parent=19 // pred_fallthru
        _
    $region20: #{_lambda_.2} parent=5 // pred_fallthru
      _
    %p173 = scmp.le.s32.totalorder 1, %s10
    %p174 = scmp.lt.s32.totalorder %s10, 3
    %p175 = pnand %p173, %p174
    %p176 = pneg %p175
    // Predicated region
    $region25: #{_lambda_.2} parent=5 // pred_check
      _
    $region26: #{_lambda_.2} parent=5 // pred_check_branch
      %178 = sbr.rel (%p175) target = $region28
    $region27: #{_lambda_.2} parent=5 // pred_region
      %s179 = ssub.s32 %s10, 1
      %p180 = scmp.lt.s32.totalorder %s20, 1
      %s181 = scalar_select %p180, %s20, 1
      %s182 = smul.addr %s181, 54
      %s183 = smul.addr %s182, 8
      %s184 = scalar_lea.vmem %s0, %s183
      %p185 = pneg %p55
      %p186 = pneg %p52
      %p187 = scmp.lt.s32.totalorder %s21, 0
      %s188 = scalar_select %p187, %s21, 0
      %s189 = smul.addr %s188, 4
      %s190 = scalar_lea.vmem %s1, %s189
      %p191 = pneg %p81
      %p192 = pneg %p78
      %p193 = pneg %p111
      %p194 = pneg %p108
      %s195 = smul.u32 16, %s22
      %p196 = scmp.lt.s32.totalorder %s20, 1
      %s197 = scalar_select %p196, %s20, 1
      %p198 = scmp.lt.s32.totalorder %s195, 15
      %s199 = scalar_select %p198, %s195, 15
      %p200 = scmp.lt.s32.totalorder %s21, 0
      %s201 = scalar_select %p200, %s21, 0
      %s202 = smul.addr %s199, 2
      %s203 = sadd.s32 %s201, %s202
      %s204 = smul.addr %s197, 32
      %s205 = sadd.s32 %s203, %s204
      %s206 = smul.addr %s205, 4
      %s207 = scalar_lea.vmem %s2, %s206
      %p208 = pneg %p139
      %p209 = pneg %p136
      %p210 = scmp.lt.s32.totalorder %s20, 1
      %s211 = scalar_select %p210, %s20, 1
      %p212 = scmp.lt.s32.totalorder %s21, 0
      %s213 = scalar_select %p212, %s21, 0
      %s214 = sadd.s32 %s213, %s211
      %s215 = smul.addr %s214, 2
      %s216 = scalar_lea.vmem %s3, %s215
      %p217 = scmp.lt.s32.totalorder %s20, 1
      %s218 = scalar_select %p217, %s20, 1
      %s219 = smul.addr %s218, 54
      %s220 = smul.addr %s219, 8
      %s221 = scalar_lea.vmem %s0, %s220
      %p222 = scmp.lt.s32.totalorder %s21, 0
      %s223 = scalar_select %p222, %s21, 0
      %s224 = smul.addr %s223, 4
      %s225 = scalar_lea.vmem %s1, %s224
      %s226 = smul.u32 16, %s22
      %p227 = scmp.lt.s32.totalorder %s20, 1
      %s228 = scalar_select %p227, %s20, 1
      %p229 = scmp.lt.s32.totalorder %s226, 15
      %s230 = scalar_select %p229, %s226, 15
      %p231 = scmp.lt.s32.totalorder %s21, 0
      %s232 = scalar_select %p231, %s21, 0
      %s233 = smul.addr %s230, 2
      %s234 = sadd.s32 %s232, %s233
      %s235 = smul.addr %s228, 32
      %s236 = sadd.s32 %s234, %s235
      %s237 = smul.addr %s236, 4
      %s238 = scalar_lea.vmem %s2, %s237
      %s239 = smul.u32 16, %s22
      %p240 = scmp.lt.s32.totalorder %s20, 1
      %s241 = scalar_select %p240, %s20, 1
      %p242 = scmp.lt.s32.totalorder %s21, 0
      %s243 = scalar_select %p242, %s21, 0
      %s244 = sadd.s32 %s243, %s241
      %s245 = smul.addr %s244, 2
      %s246 = scalar_lea.vmem %s3, %s245
      %s248 = smul.u32 %s22, 16
      %s249 = smul.u32 %s248, 24
      %s250 = scalar_lea.vmem %s221, %s249
      %v251 = vld [vmem:[%s250] sm:$0xff]
      %v252 = vld [vmem:[%s250 + $0x8] sm:$0xff]
      %v253 = vld [vmem:[%s250 + $0x10] sm:$0xff]
      %v254 = vld [vmem:[%s250 + $0x18] sm:$0xff]
      %v255 = vld [vmem:[%s250 + $0x20] sm:$0xff]
      %v256 = vld [vmem:[%s250 + $0x28] sm:$0xff]
      %v257 = vld [vmem:[%s250 + $0x30] sm:$0xff]
      %v258 = vld [vmem:[%s250 + $0x38] sm:$0xff]
      %v259 = vld [vmem:[%s250 + $0x40] sm:$0xff]
      %v260 = vld [vmem:[%s250 + $0x48] sm:$0xff]
      %v261 = vld [vmem:[%s250 + $0x50] sm:$0xff]
      %v262 = vld [vmem:[%s250 + $0x58] sm:$0xff]
      %v263 = vld [vmem:[%s250 + $0x60] sm:$0xff]
      %v264 = vld [vmem:[%s250 + $0x68] sm:$0xff]
      %v265 = vld [vmem:[%s250 + $0x70] sm:$0xff]
      %v266 = vld [vmem:[%s250 + $0x78] sm:$0xff]
      %v267 = vld [vmem:[%s250 + $0x80] sm:$0xff]
      %v268 = vld [vmem:[%s250 + $0x88] sm:$0xff]
      %v269 = vld [vmem:[%s250 + $0x90] sm:$0xff]
      %v270 = vld [vmem:[%s250 + $0x98] sm:$0xff]
      %v271 = vld [vmem:[%s250 + $0xa0] sm:$0xff]
      %v272 = vld [vmem:[%s250 + $0xa8] sm:$0xff]
      %v273 = vld [vmem:[%s250 + $0xb0] sm:$0xff]
      %v274 = vld [vmem:[%s250 + $0xb8] sm:$0xff]
      %v275 = vld [vmem:[%s250 + $0xc0] sm:$0xff]
      %v276 = vld [vmem:[%s250 + $0xc8] sm:$0xff]
      %v277 = vld [vmem:[%s250 + $0xd0] sm:$0xff]
      %v278 = vld [vmem:[%s250 + $0xd8] sm:$0xff]
      %v279 = vld [vmem:[%s250 + $0xe0] sm:$0xff]
      %v280 = vld [vmem:[%s250 + $0xe8] sm:$0xff]
      %v281 = vld [vmem:[%s250 + $0xf0] sm:$0xff]
      %v282 = vld [vmem:[%s250 + $0xf8] sm:$0xff]
      %v283 = vld [vmem:[%s250 + $0x100] sm:$0xff]
      %v284 = vld [vmem:[%s250 + $0x108] sm:$0xff]
      %v285 = vld [vmem:[%s250 + $0x110] sm:$0xff]
      %v286 = vld [vmem:[%s250 + $0x118] sm:$0xff]
      %v287 = vld [vmem:[%s250 + $0x120] sm:$0xff]
      %v288 = vld [vmem:[%s250 + $0x128] sm:$0xff]
      %v289 = vld [vmem:[%s250 + $0x130] sm:$0xff]
      %v290 = vld [vmem:[%s250 + $0x138] sm:$0xff]
      %v291 = vld [vmem:[%s250 + $0x140] sm:$0xff]
      %v292 = vld [vmem:[%s250 + $0x148] sm:$0xff]
      %v293 = vld [vmem:[%s250 + $0x150] sm:$0xff]
      %v294 = vld [vmem:[%s250 + $0x158] sm:$0xff]
      %v295 = vld [vmem:[%s250 + $0x160] sm:$0xff]
      %v296 = vld [vmem:[%s250 + $0x168] sm:$0xff]
      %v297 = vld [vmem:[%s250 + $0x170] sm:$0xff]
      %v298 = vld [vmem:[%s250 + $0x178] sm:$0xff]
      %v299 = vld [vmem:[%s250 + $0x180] sm:$0xff]
      %v300 = vld [vmem:[%s250 + $0x188] sm:$0xff]
      %v301 = vld [vmem:[%s250 + $0x190] sm:$0xff]
      %v302 = vld [vmem:[%s250 + $0x198] sm:$0xff]
      %v303 = vld [vmem:[%s250 + $0x1a0] sm:$0xff]
      %v304 = vld [vmem:[%s250 + $0x1a8] sm:$0xff]
      %v305 = vrot.slane %v251, 1
      %v306 = vrot.slane %v254, 1
      %v307 = vrot.slane %v257, 1
      %v308 = vrot.slane %v260, 1
      %v309 = vrot.slane %v263, 1
      %v310 = vrot.slane %v266, 1
      %v311 = vrot.slane %v269, 1
      %v312 = vrot.slane %v272, 1
      %v313 = vrot.slane %v275, 1
      %v314 = vrot.slane %v278, 1
      %v315 = vrot.slane %v281, 1
      %v316 = vrot.slane %v284, 1
      %v317 = vrot.slane %v287, 1
      %v318 = vrot.slane %v290, 1
      %v319 = vrot.slane %v293, 1
      %v320 = vrot.slane %v296, 1
      %v321 = vrot.slane %v299, 1
      %v322 = vrot.slane %v302, 1
      %v323 = vrot.slane %v252, 1
      %v324 = vrot.slane %v255, 1
      %v325 = vrot.slane %v258, 1
      %v326 = vrot.slane %v261, 1
      %v327 = vrot.slane %v264, 1
      %v328 = vrot.slane %v267, 1
      %v329 = vrot.slane %v270, 1
      %v330 = vrot.slane %v273, 1
      %v331 = vrot.slane %v276, 1
      %v332 = vrot.slane %v279, 1
      %v333 = vrot.slane %v282, 1
      %v334 = vrot.slane %v285, 1
      %v335 = vrot.slane %v288, 1
      %v336 = vrot.slane %v291, 1
      %v337 = vrot.slane %v294, 1
      %v338 = vrot.slane %v297, 1
      %v339 = vrot.slane %v300, 1
      %v340 = vrot.slane %v303, 1
      %v341 = vrot.slane %v253, 1
      %v342 = vrot.slane %v256, 1
      %v343 = vrot.slane %v259, 1
      %v344 = vrot.slane %v262, 1
      %v345 = vrot.slane %v265, 1
      %v346 = vrot.slane %v268, 1
      %v347 = vrot.slane %v271, 1
      %v348 = vrot.slane %v274, 1
      %v349 = vrot.slane %v277, 1
      %v350 = vrot.slane %v280, 1
      %v351 = vrot.slane %v283, 1
      %v352 = vrot.slane %v286, 1
      %v353 = vrot.slane %v289, 1
      %v354 = vrot.slane %v292, 1
      %v355 = vrot.slane %v295, 1
      %v356 = vrot.slane %v298, 1
      %v357 = vrot.slane %v301, 1
      %v358 = vrot.slane %v304, 1
      %v359 = vlaneseq
      %v360 = vshrl.u32 %v359, 7
      %vm361 = vcmp.lt.s32.totalorder %v360, 7
      %v362 = vsel %vm361, %v323, %v341
      %v363 = vsel %vm361, %v324, %v342
      %v364 = vsel %vm361, %v325, %v343
      %v365 = vsel %vm361, %v326, %v344
      %v366 = vsel %vm361, %v327, %v345
      %v367 = vsel %vm361, %v328, %v346
      %v368 = vsel %vm361, %v329, %v347
      %v369 = vsel %vm361, %v330, %v348
      %v370 = vsel %vm361, %v331, %v349
      %v371 = vsel %vm361, %v332, %v350
      %v372 = vsel %vm361, %v333, %v351
      %v373 = vsel %vm361, %v334, %v352
      %v374 = vsel %vm361, %v335, %v353
      %v375 = vsel %vm361, %v336, %v354
      %v376 = vsel %vm361, %v337, %v355
      %v377 = vsel %vm361, %v338, %v356
      %v378 = vsel %vm361, %v339, %v357
      %v379 = vsel %vm361, %v340, %v358
      %v380 = vsel %vm361, %v305, %v323
      %v381 = vsel %vm361, %v306, %v324
      %v382 = vsel %vm361, %v307, %v325
      %v383 = vsel %vm361, %v308, %v326
      %v384 = vsel %vm361, %v309, %v327
      %v385 = vsel %vm361, %v310, %v328
      %v386 = vsel %vm361, %v311, %v329
      %v387 = vsel %vm361, %v312, %v330
      %v388 = vsel %vm361, %v313, %v331
      %v389 = vsel %vm361, %v314, %v332
      %v390 = vsel %vm361, %v315, %v333
      %v391 = vsel %vm361, %v316, %v334
      %v392 = vsel %vm361, %v317, %v335
      %v393 = vsel %vm361, %v318, %v336
      %v394 = vsel %vm361, %v319, %v337
      %v395 = vsel %vm361, %v320, %v338
      %v396 = vsel %vm361, %v321, %v339
      %v397 = vsel %vm361, %v322, %v340
      %v398 = vrot.slane %v251, 2
      %v399 = vrot.slane %v254, 2
      %v400 = vrot.slane %v257, 2
      %v401 = vrot.slane %v260, 2
      %v402 = vrot.slane %v263, 2
      %v403 = vrot.slane %v266, 2
      %v404 = vrot.slane %v269, 2
      %v405 = vrot.slane %v272, 2
      %v406 = vrot.slane %v275, 2
      %v407 = vrot.slane %v278, 2
      %v408 = vrot.slane %v281, 2
      %v409 = vrot.slane %v284, 2
      %v410 = vrot.slane %v287, 2
      %v411 = vrot.slane %v290, 2
      %v412 = vrot.slane %v293, 2
      %v413 = vrot.slane %v296, 2
      %v414 = vrot.slane %v299, 2
      %v415 = vrot.slane %v302, 2
      %v416 = vrot.slane %v252, 2
      %v417 = vrot.slane %v255, 2
      %v418 = vrot.slane %v258, 2
      %v419 = vrot.slane %v261, 2
      %v420 = vrot.slane %v264, 2
      %v421 = vrot.slane %v267, 2
      %v422 = vrot.slane %v270, 2
      %v423 = vrot.slane %v273, 2
      %v424 = vrot.slane %v276, 2
      %v425 = vrot.slane %v279, 2
      %v426 = vrot.slane %v282, 2
      %v427 = vrot.slane %v285, 2
      %v428 = vrot.slane %v288, 2
      %v429 = vrot.slane %v291, 2
      %v430 = vrot.slane %v294, 2
      %v431 = vrot.slane %v297, 2
      %v432 = vrot.slane %v300, 2
      %v433 = vrot.slane %v303, 2
      %v434 = vrot.slane %v253, 2
      %v435 = vrot.slane %v256, 2
      %v436 = vrot.slane %v259, 2
      %v437 = vrot.slane %v262, 2
      %v438 = vrot.slane %v265, 2
      %v439 = vrot.slane %v268, 2
      %v440 = vrot.slane %v271, 2
      %v441 = vrot.slane %v274, 2
      %v442 = vrot.slane %v277, 2
      %v443 = vrot.slane %v280, 2
      %v444 = vrot.slane %v283, 2
      %v445 = vrot.slane %v286, 2
      %v446 = vrot.slane %v289, 2
      %v447 = vrot.slane %v292, 2
      %v448 = vrot.slane %v295, 2
      %v449 = vrot.slane %v298, 2
      %v450 = vrot.slane %v301, 2
      %v451 = vrot.slane %v304, 2
      %vm452 = vcmp.lt.s32.totalorder %v360, 6
      %v453 = vsel %vm452, %v416, %v434
      %v454 = vsel %vm452, %v417, %v435
      %v455 = vsel %vm452, %v418, %v436
      %v456 = vsel %vm452, %v419, %v437
      %v457 = vsel %vm452, %v420, %v438
      %v458 = vsel %vm452, %v421, %v439
      %v459 = vsel %vm452, %v422, %v440
      %v460 = vsel %vm452, %v423, %v441
      %v461 = vsel %vm452, %v424, %v442
      %v462 = vsel %vm452, %v425, %v443
      %v463 = vsel %vm452, %v426, %v444
      %v464 = vsel %vm452, %v427, %v445
      %v465 = vsel %vm452, %v428, %v446
      %v466 = vsel %vm452, %v429, %v447
      %v467 = vsel %vm452, %v430, %v448
      %v468 = vsel %vm452, %v431, %v449
      %v469 = vsel %vm452, %v432, %v450
      %v470 = vsel %vm452, %v433, %v451
      %v471 = vsel %vm452, %v398, %v416
      %v472 = vsel %vm452, %v399, %v417
      %v473 = vsel %vm452, %v400, %v418
      %v474 = vsel %vm452, %v401, %v419
      %v475 = vsel %vm452, %v402, %v420
      %v476 = vsel %vm452, %v403, %v421
      %v477 = vsel %vm452, %v404, %v422
      %v478 = vsel %vm452, %v405, %v423
      %v479 = vsel %vm452, %v406, %v424
      %v480 = vsel %vm452, %v407, %v425
      %v481 = vsel %vm452, %v408, %v426
      %v482 = vsel %vm452, %v409, %v427
      %v483 = vsel %vm452, %v410, %v428
      %v484 = vsel %vm452, %v411, %v429
      %v485 = vsel %vm452, %v412, %v430
      %v486 = vsel %vm452, %v413, %v431
      %v487 = vsel %vm452, %v414, %v432
      %v488 = vsel %vm452, %v415, %v433
      %525 = vrot.lane.b32.xlu0 %v380, 32
      %v526 = vpop.permute.xlu0 %525
      %527 = vrot.lane.b32.xlu0 %v362, 32
      %v528 = vpop.permute.xlu0 %527
      %529 = vrot.lane.b32.xlu0 %v381, 32
      %v530 = vpop.permute.xlu0 %529
      %531 = vrot.lane.b32.xlu0 %v363, 32
      %v532 = vpop.permute.xlu0 %531
      %533 = vrot.lane.b32.xlu0 %v382, 32
      %v534 = vpop.permute.xlu0 %533
      %535 = vrot.lane.b32.xlu0 %v364, 32
      %v536 = vpop.permute.xlu0 %535
      %537 = vrot.lane.b32.xlu0 %v383, 32
      %v538 = vpop.permute.xlu0 %537
      %539 = vrot.lane.b32.xlu0 %v365, 32
      %v540 = vpop.permute.xlu0 %539
      %541 = vrot.lane.b32.xlu0 %v384, 32
      %v542 = vpop.permute.xlu0 %541
      %543 = vrot.lane.b32.xlu0 %v366, 32
      %v544 = vpop.permute.xlu0 %543
      %545 = vrot.lane.b32.xlu0 %v385, 32
      %v546 = vpop.permute.xlu0 %545
      %547 = vrot.lane.b32.xlu0 %v367, 32
      %v548 = vpop.permute.xlu0 %547
      %549 = vrot.lane.b32.xlu0 %v386, 32
      %v550 = vpop.permute.xlu0 %549
      %551 = vrot.lane.b32.xlu0 %v368, 32
      %v552 = vpop.permute.xlu0 %551
      %553 = vrot.lane.b32.xlu0 %v387, 32
      %v554 = vpop.permute.xlu0 %553
      %555 = vrot.lane.b32.xlu0 %v369, 32
      %v556 = vpop.permute.xlu0 %555
      %557 = vrot.lane.b32.xlu0 %v388, 32
      %v558 = vpop.permute.xlu0 %557
      %559 = vrot.lane.b32.xlu0 %v370, 32
      %v560 = vpop.permute.xlu0 %559
      %561 = vrot.lane.b32.xlu0 %v389, 32
      %v562 = vpop.permute.xlu0 %561
      %563 = vrot.lane.b32.xlu0 %v371, 32
      %v564 = vpop.permute.xlu0 %563
      %565 = vrot.lane.b32.xlu0 %v390, 32
      %v566 = vpop.permute.xlu0 %565
      %567 = vrot.lane.b32.xlu0 %v372, 32
      %v568 = vpop.permute.xlu0 %567
      %569 = vrot.lane.b32.xlu0 %v391, 32
      %v570 = vpop.permute.xlu0 %569
      %571 = vrot.lane.b32.xlu0 %v373, 32
      %v572 = vpop.permute.xlu0 %571
      %573 = vrot.lane.b32.xlu0 %v392, 32
      %v574 = vpop.permute.xlu0 %573
      %575 = vrot.lane.b32.xlu0 %v374, 32
      %v576 = vpop.permute.xlu0 %575
      %577 = vrot.lane.b32.xlu0 %v393, 32
      %v578 = vpop.permute.xlu0 %577
      %579 = vrot.lane.b32.xlu0 %v375, 32
      %v580 = vpop.permute.xlu0 %579
      %581 = vrot.lane.b32.xlu0 %v394, 32
      %v582 = vpop.permute.xlu0 %581
      %583 = vrot.lane.b32.xlu0 %v376, 32
      %v584 = vpop.permute.xlu0 %583
      %585 = vrot.lane.b32.xlu0 %v395, 32
      %v586 = vpop.permute.xlu0 %585
      %587 = vrot.lane.b32.xlu0 %v377, 32
      %v588 = vpop.permute.xlu0 %587
      %589 = vrot.lane.b32.xlu0 %v396, 32
      %v590 = vpop.permute.xlu0 %589
      %591 = vrot.lane.b32.xlu0 %v378, 32
      %v592 = vpop.permute.xlu0 %591
      %593 = vrot.lane.b32.xlu0 %v397, 32
      %v594 = vpop.permute.xlu0 %593
      %595 = vrot.lane.b32.xlu0 %v379, 32
      %v596 = vpop.permute.xlu0 %595
      %669 = vrot.lane.b32.xlu0 %v471, 64
      %v670 = vpop.permute.xlu0 %669
      %671 = vrot.lane.b32.xlu0 %v453, 64
      %v672 = vpop.permute.xlu0 %671
      %673 = vrot.lane.b32.xlu0 %v472, 64
      %v674 = vpop.permute.xlu0 %673
      %675 = vrot.lane.b32.xlu0 %v454, 64
      %v676 = vpop.permute.xlu0 %675
      %677 = vrot.lane.b32.xlu0 %v473, 64
      %v678 = vpop.permute.xlu0 %677
      %679 = vrot.lane.b32.xlu0 %v455, 64
      %v680 = vpop.permute.xlu0 %679
      %681 = vrot.lane.b32.xlu0 %v474, 64
      %v682 = vpop.permute.xlu0 %681
      %683 = vrot.lane.b32.xlu0 %v456, 64
      %v684 = vpop.permute.xlu0 %683
      %685 = vrot.lane.b32.xlu0 %v475, 64
      %v686 = vpop.permute.xlu0 %685
      %687 = vrot.lane.b32.xlu0 %v457, 64
      %v688 = vpop.permute.xlu0 %687
      %689 = vrot.lane.b32.xlu0 %v476, 64
      %v690 = vpop.permute.xlu0 %689
      %691 = vrot.lane.b32.xlu0 %v458, 64
      %v692 = vpop.permute.xlu0 %691
      %693 = vrot.lane.b32.xlu0 %v477, 64
      %v694 = vpop.permute.xlu0 %693
      %695 = vrot.lane.b32.xlu0 %v459, 64
      %v696 = vpop.permute.xlu0 %695
      %697 = vrot.lane.b32.xlu0 %v478, 64
      %v698 = vpop.permute.xlu0 %697
      %699 = vrot.lane.b32.xlu0 %v460, 64
      %v700 = vpop.permute.xlu0 %699
      %701 = vrot.lane.b32.xlu0 %v479, 64
      %v702 = vpop.permute.xlu0 %701
      %703 = vrot.lane.b32.xlu0 %v461, 64
      %v704 = vpop.permute.xlu0 %703
      %705 = vrot.lane.b32.xlu0 %v480, 64
      %v706 = vpop.permute.xlu0 %705
      %707 = vrot.lane.b32.xlu0 %v462, 64
      %v708 = vpop.permute.xlu0 %707
      %709 = vrot.lane.b32.xlu0 %v481, 64
      %v710 = vpop.permute.xlu0 %709
      %711 = vrot.lane.b32.xlu0 %v463, 64
      %v712 = vpop.permute.xlu0 %711
      %713 = vrot.lane.b32.xlu0 %v482, 64
      %v714 = vpop.permute.xlu0 %713
      %715 = vrot.lane.b32.xlu0 %v464, 64
      %v716 = vpop.permute.xlu0 %715
      %717 = vrot.lane.b32.xlu0 %v483, 64
      %v718 = vpop.permute.xlu0 %717
      %719 = vrot.lane.b32.xlu0 %v465, 64
      %v720 = vpop.permute.xlu0 %719
      %721 = vrot.lane.b32.xlu0 %v484, 64
      %v722 = vpop.permute.xlu0 %721
      %723 = vrot.lane.b32.xlu0 %v466, 64
      %v724 = vpop.permute.xlu0 %723
      %725 = vrot.lane.b32.xlu0 %v485, 64
      %v726 = vpop.permute.xlu0 %725
      %727 = vrot.lane.b32.xlu0 %v467, 64
      %v728 = vpop.permute.xlu0 %727
      %729 = vrot.lane.b32.xlu0 %v486, 64
      %v730 = vpop.permute.xlu0 %729
      %731 = vrot.lane.b32.xlu0 %v468, 64
      %v732 = vpop.permute.xlu0 %731
      %733 = vrot.lane.b32.xlu0 %v487, 64
      %v734 = vpop.permute.xlu0 %733
      %735 = vrot.lane.b32.xlu0 %v469, 64
      %v736 = vpop.permute.xlu0 %735
      %737 = vrot.lane.b32.xlu0 %v488, 64
      %v738 = vpop.permute.xlu0 %737
      %739 = vrot.lane.b32.xlu0 %v470, 64
      %v740 = vpop.permute.xlu0 %739
      %vm777 = vcmask 261120
      %v778 = vsel %vm777, %v251, %v526
      %v779 = vsel %vm777, %v252, %v528
      %v780 = vsel %vm777, %v254, %v530
      %v781 = vsel %vm777, %v255, %v532
      %v782 = vsel %vm777, %v257, %v534
      %v783 = vsel %vm777, %v258, %v536
      %v784 = vsel %vm777, %v260, %v538
      %v785 = vsel %vm777, %v261, %v540
      %v786 = vsel %vm777, %v263, %v542
      %v787 = vsel %vm777, %v264, %v544
      %v788 = vsel %vm777, %v266, %v546
      %v789 = vsel %vm777, %v267, %v548
      %v790 = vsel %vm777, %v269, %v550
      %v791 = vsel %vm777, %v270, %v552
      %v792 = vsel %vm777, %v272, %v554
      %v793 = vsel %vm777, %v273, %v556
      %v794 = vsel %vm777, %v275, %v558
      %v795 = vsel %vm777, %v276, %v560
      %v796 = vsel %vm777, %v278, %v562
      %v797 = vsel %vm777, %v279, %v564
      %v798 = vsel %vm777, %v281, %v566
      %v799 = vsel %vm777, %v282, %v568
      %v800 = vsel %vm777, %v284, %v570
      %v801 = vsel %vm777, %v285, %v572
      %v802 = vsel %vm777, %v287, %v574
      %v803 = vsel %vm777, %v288, %v576
      %v804 = vsel %vm777, %v290, %v578
      %v805 = vsel %vm777, %v291, %v580
      %v806 = vsel %vm777, %v293, %v582
      %v807 = vsel %vm777, %v294, %v584
      %v808 = vsel %vm777, %v296, %v586
      %v809 = vsel %vm777, %v297, %v588
      %v810 = vsel %vm777, %v299, %v590
      %v811 = vsel %vm777, %v300, %v592
      %v812 = vsel %vm777, %v302, %v594
      %v813 = vsel %vm777, %v303, %v596
      %vm814 = vcmask 523264
      %v815 = vsel %vm814, %v778, %v670
      %v816 = vsel %vm814, %v779, %v672
      %v817 = vsel %vm814, %v780, %v674
      %v818 = vsel %vm814, %v781, %v676
      %v819 = vsel %vm814, %v782, %v678
      %v820 = vsel %vm814, %v783, %v680
      %v821 = vsel %vm814, %v784, %v682
      %v822 = vsel %vm814, %v785, %v684
      %v823 = vsel %vm814, %v786, %v686
      %v824 = vsel %vm814, %v787, %v688
      %v825 = vsel %vm814, %v788, %v690
      %v826 = vsel %vm814, %v789, %v692
      %v827 = vsel %vm814, %v790, %v694
      %v828 = vsel %vm814, %v791, %v696
      %v829 = vsel %vm814, %v792, %v698
      %v830 = vsel %vm814, %v793, %v700
      %v831 = vsel %vm814, %v794, %v702
      %v832 = vsel %vm814, %v795, %v704
      %v833 = vsel %vm814, %v796, %v706
      %v834 = vsel %vm814, %v797, %v708
      %v835 = vsel %vm814, %v798, %v710
      %v836 = vsel %vm814, %v799, %v712
      %v837 = vsel %vm814, %v800, %v714
      %v838 = vsel %vm814, %v801, %v716
      %v839 = vsel %vm814, %v802, %v718
      %v840 = vsel %vm814, %v803, %v720
      %v841 = vsel %vm814, %v804, %v722
      %v842 = vsel %vm814, %v805, %v724
      %v843 = vsel %vm814, %v806, %v726
      %v844 = vsel %vm814, %v807, %v728
      %v845 = vsel %vm814, %v808, %v730
      %v846 = vsel %vm814, %v809, %v732
      %v847 = vsel %vm814, %v810, %v734
      %v848 = vsel %vm814, %v811, %v736
      %v849 = vsel %vm814, %v812, %v738
      %v850 = vsel %vm814, %v813, %v740
      %v851 = vpack.c.bf16 %v815, %v815
      %v852 = vpack.c.bf16 %v816, %v816
      %v853 = vpack.c.bf16 %v817, %v817
      %v854 = vpack.c.bf16 %v818, %v818
      %v855 = vpack.c.bf16 %v819, %v819
      %v856 = vpack.c.bf16 %v820, %v820
      %v857 = vpack.c.bf16 %v821, %v821
      %v858 = vpack.c.bf16 %v822, %v822
      %v859 = vpack.c.bf16 %v823, %v823
      %v860 = vpack.c.bf16 %v824, %v824
      %v861 = vpack.c.bf16 %v825, %v825
      %v862 = vpack.c.bf16 %v826, %v826
      %v863 = vpack.c.bf16 %v827, %v827
      %v864 = vpack.c.bf16 %v828, %v828
      %v865 = vpack.c.bf16 %v829, %v829
      %v866 = vpack.c.bf16 %v830, %v830
      %v867 = vpack.c.bf16 %v831, %v831
      %v868 = vpack.c.bf16 %v832, %v832
      %v869 = vpack.c.bf16 %v833, %v833
      %v870 = vpack.c.bf16 %v834, %v834
      %v871 = vpack.c.bf16 %v835, %v835
      %v872 = vpack.c.bf16 %v836, %v836
      %v873 = vpack.c.bf16 %v837, %v837
      %v874 = vpack.c.bf16 %v838, %v838
      %v875 = vpack.c.bf16 %v839, %v839
      %v876 = vpack.c.bf16 %v840, %v840
      %v877 = vpack.c.bf16 %v841, %v841
      %v878 = vpack.c.bf16 %v842, %v842
      %v879 = vpack.c.bf16 %v843, %v843
      %v880 = vpack.c.bf16 %v844, %v844
      %v881 = vpack.c.bf16 %v845, %v845
      %v882 = vpack.c.bf16 %v846, %v846
      %v883 = vpack.c.bf16 %v847, %v847
      %v884 = vpack.c.bf16 %v848, %v848
      %v885 = vpack.c.bf16 %v849, %v849
      %v886 = vpack.c.bf16 %v850, %v850
      %v887 = vld [vmem:[%s225] sm:$0xf]
      %v888 = vld [vmem:[%s225 + $0x4] sm:$0xf]
      %v889 = vld [vmem:[%s225 + $0x8] sm:$0xf]
      %v890 = vld [vmem:[%s225 + $0xc] sm:$0xf]
      %v891 = vld [vmem:[%s225 + $0x10] sm:$0xf]
      %v892 = vld [vmem:[%s225 + $0x14] sm:$0xf]
      %v893 = vld [vmem:[%s225 + $0x18] sm:$0xf]
      %v894 = vld [vmem:[%s225 + $0x1c] sm:$0xf]
      %v895 = vld [vmem:[%s225 + $0x20] sm:$0xf]
      %v896 = vld [vmem:[%s225 + $0x24] sm:$0xf]
      %v897 = vld [vmem:[%s225 + $0x28] sm:$0xf]
      %v898 = vld [vmem:[%s225 + $0x2c] sm:$0xf]
      %s899 = scalar_lea.vmem %s225, 48
      %v900 = vld [vmem:[%s899] sm:$0xf]
      %v901 = vld [vmem:[%s899 + $0x4] sm:$0xf]
      %v902 = vld [vmem:[%s899 + $0x8] sm:$0xf]
      %v903 = vld [vmem:[%s899 + $0xc] sm:$0xf]
      %v904 = vld [vmem:[%s899 + $0x10] sm:$0xf]
      %v905 = vld [vmem:[%s899 + $0x14] sm:$0xf]
      %v906 = vld [vmem:[%s899 + $0x18] sm:$0xf]
      %v907 = vld [vmem:[%s899 + $0x1c] sm:$0xf]
      %v908 = vld [vmem:[%s899 + $0x20] sm:$0xf]
      %v909 = vld [vmem:[%s899 + $0x24] sm:$0xf]
      %v910 = vld [vmem:[%s899 + $0x28] sm:$0xf]
      %v911 = vld [vmem:[%s899 + $0x2c] sm:$0xf]
      %v944 = vunpack.c.l.b16 %v853
      %v945 = vunpack.c.l.b16 %v854
      %v946 = vunpack.c.l.b16 %v855
      %v947 = vunpack.c.l.b16 %v856
      %v948 = vunpack.c.l.b16 %v857
      %v949 = vunpack.c.l.b16 %v858
      %v950 = vunpack.c.l.b16 %v859
      %v951 = vunpack.c.l.b16 %v860
      %v952 = vunpack.c.l.b16 %v861
      %v953 = vunpack.c.l.b16 %v862
      %v954 = vunpack.c.l.b16 %v863
      %v955 = vunpack.c.l.b16 %v864
      %v956 = vunpack.c.l.b16 %v865
      %v957 = vunpack.c.l.b16 %v866
      %v958 = vunpack.c.l.b16 %v867
      %v959 = vunpack.c.l.b16 %v868
      %v960 = vunpack.c.l.b16 %v869
      %v961 = vunpack.c.l.b16 %v870
      %v962 = vunpack.c.l.b16 %v871
      %v963 = vunpack.c.l.b16 %v872
      %v964 = vunpack.c.l.b16 %v873
      %v965 = vunpack.c.l.b16 %v874
      %v966 = vunpack.c.l.b16 %v875
      %v967 = vunpack.c.l.b16 %v876
      %v968 = vunpack.c.l.b16 %v877
      %v969 = vunpack.c.l.b16 %v878
      %v970 = vunpack.c.l.b16 %v879
      %v971 = vunpack.c.l.b16 %v880
      %v972 = vunpack.c.l.b16 %v881
      %v973 = vunpack.c.l.b16 %v882
      %v974 = vunpack.c.l.b16 %v883
      %v975 = vunpack.c.l.b16 %v884
      %v976 = vpack.c.b16 %v945, %v944
      %v977 = vpack.c.b16 %v947, %v946
      %v978 = vpack.c.b16 %v949, %v948
      %v979 = vpack.c.b16 %v951, %v950
      %v980 = vpack.c.b16 %v953, %v952
      %v981 = vpack.c.b16 %v955, %v954
      %v982 = vpack.c.b16 %v957, %v956
      %v983 = vpack.c.b16 %v959, %v958
      %v984 = vpack.c.b16 %v961, %v960
      %v985 = vpack.c.b16 %v963, %v962
      %v986 = vpack.c.b16 %v965, %v964
      %v987 = vpack.c.b16 %v967, %v966
      %v988 = vpack.c.b16 %v969, %v968
      %v989 = vpack.c.b16 %v971, %v970
      %v990 = vpack.c.b16 %v973, %v972
      %v991 = vpack.c.b16 %v975, %v974
      %v1004 = vunpack.c.l.b16 %v900
      %v1005 = vunpack.c.l.b16 %v901
      %v1006 = vunpack.c.l.b16 %v902
      %v1007 = vunpack.c.l.b16 %v903
      %v1008 = vunpack.c.l.b16 %v904
      %v1009 = vunpack.c.l.b16 %v905
      %v1010 = vunpack.c.l.b16 %v906
      %v1011 = vunpack.c.l.b16 %v907
      %v1012 = vunpack.c.l.b16 %v908
      %v1013 = vunpack.c.l.b16 %v909
      %v1014 = vunpack.c.l.b16 %v910
      %v1015 = vunpack.c.l.b16 %v911
      %v1016 = vpack.c.b16 %v1005, %v1004
      %v1017 = vpack.c.b16 %v1007, %v1006
      %v1018 = vpack.c.b16 %v1009, %v1008
      %v1019 = vpack.c.b16 %v1011, %v1010
      %v1020 = vpack.c.b16 %v1013, %v1012
      %v1021 = vpack.c.b16 %v1015, %v1014
      %vm1028 = vcmask 785408
      %v1030 = vsel %vm1028, %v976, 0
      %v1033 = vsel %vm1028, %v977, 0
      %v1036 = vsel %vm1028, %v978, 0
      %v1039 = vsel %vm1028, %v979, 0
      %v1042 = vsel %vm1028, %v980, 0
      %v1045 = vsel %vm1028, %v981, 0
      %v1048 = vsel %vm1028, %v982, 0
      %v1051 = vsel %vm1028, %v983, 0
      %v1054 = vsel %vm1028, %v984, 0
      %v1057 = vsel %vm1028, %v985, 0
      %v1060 = vsel %vm1028, %v986, 0
      %v1063 = vsel %vm1028, %v987, 0
      %v1066 = vsel %vm1028, %v988, 0
      %v1069 = vsel %vm1028, %v989, 0
      %v1072 = vsel %vm1028, %v990, 0
      %v1075 = vsel %vm1028, %v991, 0
      %1077 = vmatpush.bf16.msra.mxu0 0
      %1078 = vmatpush.bf16.msra.mxu0 0
      %1079 = vmatpush.bf16.msra.mxu0 %v1021
      %1080 = vmatpush.bf16.msra.mxu0 %v1020
      %1081 = vmatpush.bf16.msra.mxu0 %v1019
      %1082 = vmatpush.bf16.msra.mxu0 %v1018
      %1083 = vmatpush.bf16.msra.mxu0 %v1017
      %1084 = vmatpush.bf16.msra.mxu0 %v1016
      %1085 = vmatmul.bf16.gmra.mxu0 %v1030
      %v1086 = vpop.f32.mrf.mxu0
      %v1087 = vadd.f32 0.0, %v1086
      %v1088 = vpop.f32.mrf.mxu0
      %v1089 = vadd.f32 0.0, %v1088
      %1090 = vmatmul.bf16.gmra.mxu0 %v1033
      %v1091 = vpop.f32.mrf.mxu0
      %v1092 = vadd.f32 0.0, %v1091
      %v1093 = vpop.f32.mrf.mxu0
      %v1094 = vadd.f32 0.0, %v1093
      %1095 = vmatmul.bf16.gmra.mxu0 %v1036
      %v1096 = vpop.f32.mrf.mxu0
      %v1097 = vadd.f32 0.0, %v1096
      %v1098 = vpop.f32.mrf.mxu0
      %v1099 = vadd.f32 0.0, %v1098
      %1100 = vmatmul.bf16.gmra.mxu0 %v1039
      %v1101 = vpop.f32.mrf.mxu0
      %v1102 = vadd.f32 0.0, %v1101
      %v1103 = vpop.f32.mrf.mxu0
      %v1104 = vadd.f32 0.0, %v1103
      %1105 = vmatmul.bf16.gmra.mxu0 %v1042
      %v1106 = vpop.f32.mrf.mxu0
      %v1107 = vadd.f32 0.0, %v1106
      %v1108 = vpop.f32.mrf.mxu0
      %v1109 = vadd.f32 0.0, %v1108
      %1110 = vmatmul.bf16.gmra.mxu0 %v1045
      %v1111 = vpop.f32.mrf.mxu0
      %v1112 = vadd.f32 0.0, %v1111
      %v1113 = vpop.f32.mrf.mxu0
      %v1114 = vadd.f32 0.0, %v1113
      %1115 = vmatmul.bf16.gmra.mxu0 %v1048
      %v1116 = vpop.f32.mrf.mxu0
      %v1117 = vadd.f32 0.0, %v1116
      %v1118 = vpop.f32.mrf.mxu0
      %v1119 = vadd.f32 0.0, %v1118
      %1120 = vmatmul.bf16.gmra.mxu0 %v1051
      %v1121 = vpop.f32.mrf.mxu0
      %v1122 = vadd.f32 0.0, %v1121
      %v1123 = vpop.f32.mrf.mxu0
      %v1124 = vadd.f32 0.0, %v1123
      %1125 = vmatmul.bf16.gmra.mxu0 %v1054
      %v1126 = vpop.f32.mrf.mxu0
      %v1127 = vadd.f32 0.0, %v1126
      %v1128 = vpop.f32.mrf.mxu0
      %v1129 = vadd.f32 0.0, %v1128
      %1130 = vmatmul.bf16.gmra.mxu0 %v1057
      %v1131 = vpop.f32.mrf.mxu0
      %v1132 = vadd.f32 0.0, %v1131
      %v1133 = vpop.f32.mrf.mxu0
      %v1134 = vadd.f32 0.0, %v1133
      %1135 = vmatmul.bf16.gmra.mxu0 %v1060
      %v1136 = vpop.f32.mrf.mxu0
      %v1137 = vadd.f32 0.0, %v1136
      %v1138 = vpop.f32.mrf.mxu0
      %v1139 = vadd.f32 0.0, %v1138
      %1140 = vmatmul.bf16.gmra.mxu0 %v1063
      %v1141 = vpop.f32.mrf.mxu0
      %v1142 = vadd.f32 0.0, %v1141
      %v1143 = vpop.f32.mrf.mxu0
      %v1144 = vadd.f32 0.0, %v1143
      %1145 = vmatmul.bf16.gmra.mxu0 %v1066
      %v1146 = vpop.f32.mrf.mxu0
      %v1147 = vadd.f32 0.0, %v1146
      %v1148 = vpop.f32.mrf.mxu0
      %v1149 = vadd.f32 0.0, %v1148
      %1150 = vmatmul.bf16.gmra.mxu0 %v1069
      %v1151 = vpop.f32.mrf.mxu0
      %v1152 = vadd.f32 0.0, %v1151
      %v1153 = vpop.f32.mrf.mxu0
      %v1154 = vadd.f32 0.0, %v1153
      %1155 = vmatmul.bf16.gmra.mxu0 %v1072
      %v1156 = vpop.f32.mrf.mxu0
      %v1157 = vadd.f32 0.0, %v1156
      %v1158 = vpop.f32.mrf.mxu0
      %v1159 = vadd.f32 0.0, %v1158
      %1160 = vmatmul.bf16.gmra.mxu0 %v1075
      %v1161 = vpop.f32.mrf.mxu0
      %v1162 = vadd.f32 0.0, %v1161
      %v1163 = vpop.f32.mrf.mxu0
      %v1164 = vadd.f32 0.0, %v1163
      %1165 = vdwg.mxu0
      %v1168 = vunpack.c.l.b16 %v851
      %v1169 = vunpack.c.l.b16 %v852
      %v1170 = vpack.c.b16 %v1169, %v1168
      %v1183 = vunpack.c.l.b16 %v887
      %v1184 = vunpack.c.l.b16 %v888
      %v1185 = vunpack.c.l.b16 %v889
      %v1186 = vunpack.c.l.b16 %v890
      %v1187 = vunpack.c.l.b16 %v891
      %v1188 = vunpack.c.l.b16 %v892
      %v1189 = vunpack.c.l.b16 %v893
      %v1190 = vunpack.c.l.b16 %v894
      %v1191 = vunpack.c.l.b16 %v895
      %v1192 = vunpack.c.l.b16 %v896
      %v1193 = vunpack.c.l.b16 %v897
      %v1194 = vunpack.c.l.b16 %v898
      %v1195 = vpack.c.b16 %v1184, %v1183
      %v1196 = vpack.c.b16 %v1186, %v1185
      %v1197 = vpack.c.b16 %v1188, %v1187
      %v1198 = vpack.c.b16 %v1190, %v1189
      %v1199 = vpack.c.b16 %v1192, %v1191
      %v1200 = vpack.c.b16 %v1194, %v1193
      %v1208 = vsel %vm1028, %v1170, 0
      %1210 = vmatpush.bf16.msra.mxu0 0
      %1211 = vmatpush.bf16.msra.mxu0 0
      %1212 = vmatpush.bf16.msra.mxu0 %v1200
      %1213 = vmatpush.bf16.msra.mxu0 %v1199
      %1214 = vmatpush.bf16.msra.mxu0 %v1198
      %1215 = vmatpush.bf16.msra.mxu0 %v1197
      %1216 = vmatpush.bf16.msra.mxu0 %v1196
      %1217 = vmatpush.bf16.msra.mxu0 %v1195
      %1218 = vmatmul.bf16.gmra.mxu0 %v1208
      %v1219 = vpop.f32.mrf.mxu0
      %v1220 = vadd.f32 %v1087, %v1219
      %v1221 = vpop.f32.mrf.mxu0
      %v1222 = vadd.f32 %v1089, %v1221
      %1223 = vmatmul.bf16.gmra.mxu0 %v1030
      %v1224 = vpop.f32.mrf.mxu0
      %v1225 = vadd.f32 %v1092, %v1224
      %v1226 = vpop.f32.mrf.mxu0
      %v1227 = vadd.f32 %v1094, %v1226
      %1228 = vmatmul.bf16.gmra.mxu0 %v1033
      %v1229 = vpop.f32.mrf.mxu0
      %v1230 = vadd.f32 %v1097, %v1229
      %v1231 = vpop.f32.mrf.mxu0
      %v1232 = vadd.f32 %v1099, %v1231
      %1233 = vmatmul.bf16.gmra.mxu0 %v1036
      %v1234 = vpop.f32.mrf.mxu0
      %v1235 = vadd.f32 %v1102, %v1234
      %v1236 = vpop.f32.mrf.mxu0
      %v1237 = vadd.f32 %v1104, %v1236
      %1238 = vmatmul.bf16.gmra.mxu0 %v1039
      %v1239 = vpop.f32.mrf.mxu0
      %v1240 = vadd.f32 %v1107, %v1239
      %v1241 = vpop.f32.mrf.mxu0
      %v1242 = vadd.f32 %v1109, %v1241
      %1243 = vmatmul.bf16.gmra.mxu0 %v1042
      %v1244 = vpop.f32.mrf.mxu0
      %v1245 = vadd.f32 %v1112, %v1244
      %v1246 = vpop.f32.mrf.mxu0
      %v1247 = vadd.f32 %v1114, %v1246
      %1248 = vmatmul.bf16.gmra.mxu0 %v1045
      %v1249 = vpop.f32.mrf.mxu0
      %v1250 = vadd.f32 %v1117, %v1249
      %v1251 = vpop.f32.mrf.mxu0
      %v1252 = vadd.f32 %v1119, %v1251
      %1253 = vmatmul.bf16.gmra.mxu0 %v1048
      %v1254 = vpop.f32.mrf.mxu0
      %v1255 = vadd.f32 %v1122, %v1254
      %v1256 = vpop.f32.mrf.mxu0
      %v1257 = vadd.f32 %v1124, %v1256
      %1258 = vmatmul.bf16.gmra.mxu0 %v1051
      %v1259 = vpop.f32.mrf.mxu0
      %v1260 = vadd.f32 %v1127, %v1259
      %v1261 = vpop.f32.mrf.mxu0
      %v1262 = vadd.f32 %v1129, %v1261
      %1263 = vmatmul.bf16.gmra.mxu0 %v1054
      %v1264 = vpop.f32.mrf.mxu0
      %v1265 = vadd.f32 %v1132, %v1264
      %v1266 = vpop.f32.mrf.mxu0
      %v1267 = vadd.f32 %v1134, %v1266
      %1268 = vmatmul.bf16.gmra.mxu0 %v1057
      %v1269 = vpop.f32.mrf.mxu0
      %v1270 = vadd.f32 %v1137, %v1269
      %v1271 = vpop.f32.mrf.mxu0
      %v1272 = vadd.f32 %v1139, %v1271
      %1273 = vmatmul.bf16.gmra.mxu0 %v1060
      %v1274 = vpop.f32.mrf.mxu0
      %v1275 = vadd.f32 %v1142, %v1274
      %v1276 = vpop.f32.mrf.mxu0
      %v1277 = vadd.f32 %v1144, %v1276
      %1278 = vmatmul.bf16.gmra.mxu0 %v1063
      %v1279 = vpop.f32.mrf.mxu0
      %v1280 = vadd.f32 %v1147, %v1279
      %v1281 = vpop.f32.mrf.mxu0
      %v1282 = vadd.f32 %v1149, %v1281
      %1283 = vmatmul.bf16.gmra.mxu0 %v1066
      %v1284 = vpop.f32.mrf.mxu0
      %v1285 = vadd.f32 %v1152, %v1284
      %v1286 = vpop.f32.mrf.mxu0
      %v1287 = vadd.f32 %v1154, %v1286
      %1288 = vmatmul.bf16.gmra.mxu0 %v1069
      %v1289 = vpop.f32.mrf.mxu0
      %v1290 = vadd.f32 %v1157, %v1289
      %v1291 = vpop.f32.mrf.mxu0
      %v1292 = vadd.f32 %v1159, %v1291
      %1293 = vmatmul.bf16.gmra.mxu0 %v1072
      %v1294 = vpop.f32.mrf.mxu0
      %v1295 = vadd.f32 %v1162, %v1294
      %v1296 = vpop.f32.mrf.mxu0
      %v1297 = vadd.f32 %v1164, %v1296
      %1298 = vdwg.mxu0
      %s1299 = scalar_lea.vmem %s225, 96
      %v1300 = vld [vmem:[%s1299] sm:$0xf]
      %v1301 = vld [vmem:[%s1299 + $0x4] sm:$0xf]
      %v1302 = vld [vmem:[%s1299 + $0x8] sm:$0xf]
      %v1303 = vld [vmem:[%s1299 + $0xc] sm:$0xf]
      %v1304 = vld [vmem:[%s1299 + $0x10] sm:$0xf]
      %v1305 = vld [vmem:[%s1299 + $0x14] sm:$0xf]
      %v1306 = vld [vmem:[%s1299 + $0x18] sm:$0xf]
      %v1307 = vld [vmem:[%s1299 + $0x1c] sm:$0xf]
      %v1308 = vld [vmem:[%s1299 + $0x20] sm:$0xf]
      %v1309 = vld [vmem:[%s1299 + $0x24] sm:$0xf]
      %v1310 = vld [vmem:[%s1299 + $0x28] sm:$0xf]
      %v1311 = vld [vmem:[%s1299 + $0x2c] sm:$0xf]
      %v1314 = vunpack.c.l.b16 %v885
      %v1315 = vunpack.c.l.b16 %v886
      %v1316 = vpack.c.b16 %v1315, %v1314
      %v1329 = vunpack.c.l.b16 %v1300
      %v1330 = vunpack.c.l.b16 %v1301
      %v1331 = vunpack.c.l.b16 %v1302
      %v1332 = vunpack.c.l.b16 %v1303
      %v1333 = vunpack.c.l.b16 %v1304
      %v1334 = vunpack.c.l.b16 %v1305
      %v1335 = vunpack.c.l.b16 %v1306
      %v1336 = vunpack.c.l.b16 %v1307
      %v1337 = vunpack.c.l.b16 %v1308
      %v1338 = vunpack.c.l.b16 %v1309
      %v1339 = vunpack.c.l.b16 %v1310
      %v1340 = vunpack.c.l.b16 %v1311
      %v1341 = vpack.c.b16 %v1330, %v1329
      %v1342 = vpack.c.b16 %v1332, %v1331
      %v1343 = vpack.c.b16 %v1334, %v1333
      %v1344 = vpack.c.b16 %v1336, %v1335
      %v1345 = vpack.c.b16 %v1338, %v1337
      %v1346 = vpack.c.b16 %v1340, %v1339
      %v1354 = vsel %vm1028, %v1316, 0
      %1356 = vmatpush.bf16.msra.mxu0 0
      %1357 = vmatpush.bf16.msra.mxu0 0
      %1358 = vmatpush.bf16.msra.mxu0 %v1346
      %1359 = vmatpush.bf16.msra.mxu0 %v1345
      %1360 = vmatpush.bf16.msra.mxu0 %v1344
      %1361 = vmatpush.bf16.msra.mxu0 %v1343
      %1362 = vmatpush.bf16.msra.mxu0 %v1342
      %1363 = vmatpush.bf16.msra.mxu0 %v1341
      %1364 = vmatmul.bf16.gmra.mxu0 %v1033
      %v1365 = vpop.f32.mrf.mxu0
      %v1366 = vadd.f32 0.0, %v1365
      %v1367 = vpop.f32.mrf.mxu0
      %v1368 = vadd.f32 0.0, %v1367
      %1369 = vmatmul.bf16.gmra.mxu0 %v1036
      %v1370 = vpop.f32.mrf.mxu0
      %v1371 = vadd.f32 0.0, %v1370
      %v1372 = vpop.f32.mrf.mxu0
      %v1373 = vadd.f32 0.0, %v1372
      %1374 = vmatmul.bf16.gmra.mxu0 %v1039
      %v1375 = vpop.f32.mrf.mxu0
      %v1376 = vadd.f32 0.0, %v1375
      %v1377 = vpop.f32.mrf.mxu0
      %v1378 = vadd.f32 0.0, %v1377
      %1379 = vmatmul.bf16.gmra.mxu0 %v1042
      %v1380 = vpop.f32.mrf.mxu0
      %v1381 = vadd.f32 0.0, %v1380
      %v1382 = vpop.f32.mrf.mxu0
      %v1383 = vadd.f32 0.0, %v1382
      %1384 = vmatmul.bf16.gmra.mxu0 %v1045
      %v1385 = vpop.f32.mrf.mxu0
      %v1386 = vadd.f32 0.0, %v1385
      %v1387 = vpop.f32.mrf.mxu0
      %v1388 = vadd.f32 0.0, %v1387
      %1389 = vmatmul.bf16.gmra.mxu0 %v1048
      %v1390 = vpop.f32.mrf.mxu0
      %v1391 = vadd.f32 0.0, %v1390
      %v1392 = vpop.f32.mrf.mxu0
      %v1393 = vadd.f32 0.0, %v1392
      %1394 = vmatmul.bf16.gmra.mxu0 %v1051
      %v1395 = vpop.f32.mrf.mxu0
      %v1396 = vadd.f32 0.0, %v1395
      %v1397 = vpop.f32.mrf.mxu0
      %v1398 = vadd.f32 0.0, %v1397
      %1399 = vmatmul.bf16.gmra.mxu0 %v1054
      %v1400 = vpop.f32.mrf.mxu0
      %v1401 = vadd.f32 0.0, %v1400
      %v1402 = vpop.f32.mrf.mxu0
      %v1403 = vadd.f32 0.0, %v1402
      %1404 = vmatmul.bf16.gmra.mxu0 %v1057
      %v1405 = vpop.f32.mrf.mxu0
      %v1406 = vadd.f32 0.0, %v1405
      %v1407 = vpop.f32.mrf.mxu0
      %v1408 = vadd.f32 0.0, %v1407
      %1409 = vmatmul.bf16.gmra.mxu0 %v1060
      %v1410 = vpop.f32.mrf.mxu0
      %v1411 = vadd.f32 0.0, %v1410
      %v1412 = vpop.f32.mrf.mxu0
      %v1413 = vadd.f32 0.0, %v1412
      %1414 = vmatmul.bf16.gmra.mxu0 %v1063
      %v1415 = vpop.f32.mrf.mxu0
      %v1416 = vadd.f32 0.0, %v1415
      %v1417 = vpop.f32.mrf.mxu0
      %v1418 = vadd.f32 0.0, %v1417
      %1419 = vmatmul.bf16.gmra.mxu0 %v1066
      %v1420 = vpop.f32.mrf.mxu0
      %v1421 = vadd.f32 0.0, %v1420
      %v1422 = vpop.f32.mrf.mxu0
      %v1423 = vadd.f32 0.0, %v1422
      %1424 = vmatmul.bf16.gmra.mxu0 %v1069
      %v1425 = vpop.f32.mrf.mxu0
      %v1426 = vadd.f32 0.0, %v1425
      %v1427 = vpop.f32.mrf.mxu0
      %v1428 = vadd.f32 0.0, %v1427
      %1429 = vmatmul.bf16.gmra.mxu0 %v1072
      %v1430 = vpop.f32.mrf.mxu0
      %v1431 = vadd.f32 0.0, %v1430
      %v1432 = vpop.f32.mrf.mxu0
      %v1433 = vadd.f32 0.0, %v1432
      %1434 = vmatmul.bf16.gmra.mxu0 %v1075
      %v1435 = vpop.f32.mrf.mxu0
      %v1436 = vadd.f32 0.0, %v1435
      %v1437 = vpop.f32.mrf.mxu0
      %v1438 = vadd.f32 0.0, %v1437
      %1439 = vmatmul.bf16.gmra.mxu0 %v1354
      %v1440 = vpop.f32.mrf.mxu0
      %v1441 = vadd.f32 0.0, %v1440
      %v1442 = vpop.f32.mrf.mxu0
      %v1443 = vadd.f32 0.0, %v1442
      %1444 = vdwg.mxu0
      %v1445 = vadd.f32 %v1220, %v1366
      %v1446 = vadd.f32 %v1222, %v1368
      %v1447 = vadd.f32 %v1225, %v1371
      %v1448 = vadd.f32 %v1227, %v1373
      %v1449 = vadd.f32 %v1230, %v1376
      %v1450 = vadd.f32 %v1232, %v1378
      %v1451 = vadd.f32 %v1235, %v1381
      %v1452 = vadd.f32 %v1237, %v1383
      %v1453 = vadd.f32 %v1240, %v1386
      %v1454 = vadd.f32 %v1242, %v1388
      %v1455 = vadd.f32 %v1245, %v1391
      %v1456 = vadd.f32 %v1247, %v1393
      %v1457 = vadd.f32 %v1250, %v1396
      %v1458 = vadd.f32 %v1252, %v1398
      %v1459 = vadd.f32 %v1255, %v1401
      %v1460 = vadd.f32 %v1257, %v1403
      %v1461 = vadd.f32 %v1260, %v1406
      %v1462 = vadd.f32 %v1262, %v1408
      %v1463 = vadd.f32 %v1265, %v1411
      %v1464 = vadd.f32 %v1267, %v1413
      %v1465 = vadd.f32 %v1270, %v1416
      %v1466 = vadd.f32 %v1272, %v1418
      %v1467 = vadd.f32 %v1275, %v1421
      %v1468 = vadd.f32 %v1277, %v1423
      %v1469 = vadd.f32 %v1280, %v1426
      %v1470 = vadd.f32 %v1282, %v1428
      %v1471 = vadd.f32 %v1285, %v1431
      %v1472 = vadd.f32 %v1287, %v1433
      %v1473 = vadd.f32 %v1290, %v1436
      %v1474 = vadd.f32 %v1292, %v1438
      %v1475 = vadd.f32 %v1295, %v1441
      %v1476 = vadd.f32 %v1297, %v1443
      %v1477 = vpack.c.bf16 %v1445, %v1445
      %v1478 = vpack.c.bf16 %v1446, %v1446
      %v1479 = vpack.c.bf16 %v1447, %v1447
      %v1480 = vpack.c.bf16 %v1448, %v1448
      %v1481 = vpack.c.bf16 %v1449, %v1449
      %v1482 = vpack.c.bf16 %v1450, %v1450
      %v1483 = vpack.c.bf16 %v1451, %v1451
      %v1484 = vpack.c.bf16 %v1452, %v1452
      %v1485 = vpack.c.bf16 %v1453, %v1453
      %v1486 = vpack.c.bf16 %v1454, %v1454
      %v1487 = vpack.c.bf16 %v1455, %v1455
      %v1488 = vpack.c.bf16 %v1456, %v1456
      %v1489 = vpack.c.bf16 %v1457, %v1457
      %v1490 = vpack.c.bf16 %v1458, %v1458
      %v1491 = vpack.c.bf16 %v1459, %v1459
      %v1492 = vpack.c.bf16 %v1460, %v1460
      %v1493 = vpack.c.bf16 %v1461, %v1461
      %v1494 = vpack.c.bf16 %v1462, %v1462
      %v1495 = vpack.c.bf16 %v1463, %v1463
      %v1496 = vpack.c.bf16 %v1464, %v1464
      %v1497 = vpack.c.bf16 %v1465, %v1465
      %v1498 = vpack.c.bf16 %v1466, %v1466
      %v1499 = vpack.c.bf16 %v1467, %v1467
      %v1500 = vpack.c.bf16 %v1468, %v1468
      %v1501 = vpack.c.bf16 %v1469, %v1469
      %v1502 = vpack.c.bf16 %v1470, %v1470
      %v1503 = vpack.c.bf16 %v1471, %v1471
      %v1504 = vpack.c.bf16 %v1472, %v1472
      %v1505 = vpack.c.bf16 %v1473, %v1473
      %v1506 = vpack.c.bf16 %v1474, %v1474
      %v1507 = vpack.c.bf16 %v1475, %v1475
      %v1508 = vpack.c.bf16 %v1476, %v1476
      %1509 = vst [vmem:[%s238] sm:$0xf] %v1477
      %1510 = vst [vmem:[%s238 + $0x4] sm:$0xf] %v1478
      %1511 = vst [vmem:[%s238 + $0x8] sm:$0xf] %v1479
      %1512 = vst [vmem:[%s238 + $0xc] sm:$0xf] %v1480
      %1513 = vst [vmem:[%s238 + $0x10] sm:$0xf] %v1481
      %1514 = vst [vmem:[%s238 + $0x14] sm:$0xf] %v1482
      %1515 = vst [vmem:[%s238 + $0x18] sm:$0xf] %v1483
      %1516 = vst [vmem:[%s238 + $0x1c] sm:$0xf] %v1484
      %1517 = vst [vmem:[%s238 + $0x20] sm:$0xf] %v1485
      %1518 = vst [vmem:[%s238 + $0x24] sm:$0xf] %v1486
      %1519 = vst [vmem:[%s238 + $0x28] sm:$0xf] %v1487
      %1520 = vst [vmem:[%s238 + $0x2c] sm:$0xf] %v1488
      %1521 = vst [vmem:[%s238 + $0x30] sm:$0xf] %v1489
      %1522 = vst [vmem:[%s238 + $0x34] sm:$0xf] %v1490
      %1523 = vst [vmem:[%s238 + $0x38] sm:$0xf] %v1491
      %1524 = vst [vmem:[%s238 + $0x3c] sm:$0xf] %v1492
      %1525 = vst [vmem:[%s238 + $0x40] sm:$0xf] %v1493
      %1526 = vst [vmem:[%s238 + $0x44] sm:$0xf] %v1494
      %1527 = vst [vmem:[%s238 + $0x48] sm:$0xf] %v1495
      %1528 = vst [vmem:[%s238 + $0x4c] sm:$0xf] %v1496
      %1529 = vst [vmem:[%s238 + $0x50] sm:$0xf] %v1497
      %1530 = vst [vmem:[%s238 + $0x54] sm:$0xf] %v1498
      %1531 = vst [vmem:[%s238 + $0x58] sm:$0xf] %v1499
      %1532 = vst [vmem:[%s238 + $0x5c] sm:$0xf] %v1500
      %1533 = vst [vmem:[%s238 + $0x60] sm:$0xf] %v1501
      %1534 = vst [vmem:[%s238 + $0x64] sm:$0xf] %v1502
      %1535 = vst [vmem:[%s238 + $0x68] sm:$0xf] %v1503
      %1536 = vst [vmem:[%s238 + $0x6c] sm:$0xf] %v1504
      %1537 = vst [vmem:[%s238 + $0x70] sm:$0xf] %v1505
      %1538 = vst [vmem:[%s238 + $0x74] sm:$0xf] %v1506
      %1539 = vst [vmem:[%s238 + $0x78] sm:$0xf] %v1507
      %1540 = vst [vmem:[%s238 + $0x7c] sm:$0xf] %v1508
      %v1541 = vadd.f32 %v1445, %v1446
      %v1542 = vadd.f32 %v1541, %v1447
      %v1543 = vadd.f32 %v1542, %v1448
      %v1544 = vadd.f32 %v1543, %v1449
      %v1545 = vadd.f32 %v1544, %v1450
      %v1546 = vadd.f32 %v1545, %v1451
      %v1547 = vadd.f32 %v1546, %v1452
      %v1548 = vadd.f32 %v1547, %v1453
      %v1549 = vadd.f32 %v1548, %v1454
      %v1550 = vadd.f32 %v1549, %v1455
      %v1551 = vadd.f32 %v1550, %v1456
      %v1552 = vadd.f32 %v1551, %v1457
      %v1553 = vadd.f32 %v1552, %v1458
      %v1554 = vadd.f32 %v1553, %v1459
      %v1555 = vadd.f32 %v1554, %v1460
      %v1556 = vadd.f32 %v1555, %v1461
      %v1557 = vadd.f32 %v1556, %v1462
      %v1558 = vadd.f32 %v1557, %v1463
      %v1559 = vadd.f32 %v1558, %v1464
      %v1560 = vadd.f32 %v1559, %v1465
      %v1561 = vadd.f32 %v1560, %v1466
      %v1562 = vadd.f32 %v1561, %v1467
      %v1563 = vadd.f32 %v1562, %v1468
      %v1564 = vadd.f32 %v1563, %v1469
      %v1565 = vadd.f32 %v1564, %v1470
      %v1566 = vadd.f32 %v1565, %v1471
      %v1567 = vadd.f32 %v1566, %v1472
      %v1568 = vadd.f32 %v1567, %v1473
      %v1569 = vadd.f32 %v1568, %v1474
      %v1570 = vadd.f32 %v1569, %v1475
      %v1571 = vadd.f32 %v1570, %v1476
      %v1572 = vrot.slane %v1571, 4
      %v1573 = vadd.f32 %v1571, %v1572
      %v1574 = vrot.slane %v1573, 2
      %v1575 = vadd.f32 %v1573, %v1574
      %v1576 = vrot.slane %v1575, 1
      %v1577 = vadd.f32 %v1575, %v1576
      %v1578 = vmul.f32 %v1445, %v1445
      %v1579 = vmul.f32 %v1446, %v1446
      %v1580 = vmul.f32 %v1447, %v1447
      %v1581 = vmul.f32 %v1448, %v1448
      %v1582 = vmul.f32 %v1449, %v1449
      %v1583 = vmul.f32 %v1450, %v1450
      %v1584 = vmul.f32 %v1451, %v1451
      %v1585 = vmul.f32 %v1452, %v1452
      %v1586 = vmul.f32 %v1453, %v1453
      %v1587 = vmul.f32 %v1454, %v1454
      %v1588 = vmul.f32 %v1455, %v1455
      %v1589 = vmul.f32 %v1456, %v1456
      %v1590 = vmul.f32 %v1457, %v1457
      %v1591 = vmul.f32 %v1458, %v1458
      %v1592 = vmul.f32 %v1459, %v1459
      %v1593 = vmul.f32 %v1460, %v1460
      %v1594 = vmul.f32 %v1461, %v1461
      %v1595 = vmul.f32 %v1462, %v1462
      %v1596 = vmul.f32 %v1463, %v1463
      %v1597 = vmul.f32 %v1464, %v1464
      %v1598 = vmul.f32 %v1465, %v1465
      %v1599 = vmul.f32 %v1466, %v1466
      %v1600 = vmul.f32 %v1467, %v1467
      %v1601 = vmul.f32 %v1468, %v1468
      %v1602 = vmul.f32 %v1469, %v1469
      %v1603 = vmul.f32 %v1470, %v1470
      %v1604 = vmul.f32 %v1471, %v1471
      %v1605 = vmul.f32 %v1472, %v1472
      %v1606 = vmul.f32 %v1473, %v1473
      %v1607 = vmul.f32 %v1474, %v1474
      %v1608 = vmul.f32 %v1475, %v1475
      %v1609 = vmul.f32 %v1476, %v1476
      %v1610 = vadd.f32 %v1578, %v1579
      %v1611 = vadd.f32 %v1610, %v1580
      %v1612 = vadd.f32 %v1611, %v1581
      %v1613 = vadd.f32 %v1612, %v1582
      %v1614 = vadd.f32 %v1613, %v1583
      %v1615 = vadd.f32 %v1614, %v1584
      %v1616 = vadd.f32 %v1615, %v1585
      %v1617 = vadd.f32 %v1616, %v1586
      %v1618 = vadd.f32 %v1617, %v1587
      %v1619 = vadd.f32 %v1618, %v1588
      %v1620 = vadd.f32 %v1619, %v1589
      %v1621 = vadd.f32 %v1620, %v1590
      %v1622 = vadd.f32 %v1621, %v1591
      %v1623 = vadd.f32 %v1622, %v1592
      %v1624 = vadd.f32 %v1623, %v1593
      %v1625 = vadd.f32 %v1624, %v1594
      %v1626 = vadd.f32 %v1625, %v1595
      %v1627 = vadd.f32 %v1626, %v1596
      %v1628 = vadd.f32 %v1627, %v1597
      %v1629 = vadd.f32 %v1628, %v1598
      %v1630 = vadd.f32 %v1629, %v1599
      %v1631 = vadd.f32 %v1630, %v1600
      %v1632 = vadd.f32 %v1631, %v1601
      %v1633 = vadd.f32 %v1632, %v1602
      %v1634 = vadd.f32 %v1633, %v1603
      %v1635 = vadd.f32 %v1634, %v1604
      %v1636 = vadd.f32 %v1635, %v1605
      %v1637 = vadd.f32 %v1636, %v1606
      %v1638 = vadd.f32 %v1637, %v1607
      %v1639 = vadd.f32 %v1638, %v1608
      %v1640 = vadd.f32 %v1639, %v1609
      %v1641 = vrot.slane %v1640, 4
      %v1642 = vadd.f32 %v1640, %v1641
      %v1643 = vrot.slane %v1642, 2
      %v1644 = vadd.f32 %v1642, %v1643
      %v1645 = vrot.slane %v1644, 1
      %v1646 = vadd.f32 %v1644, %v1645
      %vm1647 = vcmask 1040384
      %v1648 = vsel %vm1647, %v1577, %v1646
      %p1649 = scmp.eq.s32.totalorder %s22, 0
      // Predicated region
      $region29: #{_lambda_.2} parent=27 // pred_check
        %p1650 = pneg %p1649
      $region30: #{_lambda_.2} parent=27 // pred_check_branch
        %1652 = sbr.rel (%p1650) target = $region32
      $region31: #{_lambda_.2} parent=27 // pred_region
        %1653 = vst [vmem:[%s246] sm:$0x3] %v1648
      $region32: #{_lambda_.2} parent=27 // pred_fallthru
        _
      %p1654 = scmp.gt.s32.totalorder %s22, 0
      // Predicated region
      $region33: #{_lambda_.2} parent=27 // pred_check
        %p1655 = pneg %p1654
      $region34: #{_lambda_.2} parent=27 // pred_check_branch
        %1657 = sbr.rel (%p1655) target = $region36
      $region35: #{_lambda_.2} parent=27 // pred_region
        %v1658 = vld [vmem:[%s246] sm:$0x3]
        %v1659 = vadd.f32 %v1658, %v1648
        %1660 = vst [vmem:[%s246] sm:$0x3] %v1659
      $region36: #{_lambda_.2} parent=27 // pred_fallthru
        _
      %s1661 = smul.u32 16, %s22
      %p1662 = scmp.lt.s32.totalorder %s20, 1
      %s1663 = scalar_select %p1662, %s20, 1
      %p1664 = scmp.lt.s32.totalorder %s1661, 15
      %s1665 = scalar_select %p1664, %s1661, 15
      %p1666 = scmp.lt.s32.totalorder %s21, 0
      %s1667 = scalar_select %p1666, %s21, 0
      %s1668 = smul.addr %s1665, 2
      %s1669 = sadd.s32 %s1667, %s1668
      %s1670 = smul.addr %s1663, 32
      %s1671 = sadd.s32 %s1669, %s1670
      %s1672 = smul.addr %s1671, 4
      %s1673 = scalar_lea.vmem %s2, %s1672
      %p1674 = scmp.lt.s32.totalorder %s20, 1
      %s1675 = scalar_select %p1674, %s20, 1
      %p1676 = scmp.lt.s32.totalorder %s21, 0
      %s1677 = scalar_select %p1676, %s21, 0
      %s1678 = sadd.s32 %s1677, %s1675
      %s1679 = smul.addr %s1678, 2
      %s1680 = scalar_lea.vmem %s3, %s1679
      // Predicated region
      $region37: #{_lambda_.2} parent=27 // pred_check
        %p1681 = pneg %p108
      $region38: #{_lambda_.2} parent=27 // pred_check_branch
        %1683 = sbr.rel (%p1681) target = $region40
      $region39: #{_lambda_.2} parent=27 // pred_region
        %s1684 = smul.u32 16, %s22
      $region40: #{_lambda_.2} parent=27 // pred_fallthru
        _
      // Predicated region
      $region41: #{_lambda_.2} parent=27 // pred_check
        %p1685 = pneg %p136
      $region42: #{_lambda_.2} parent=27 // pred_check_branch
        %1687 = sbr.rel (%p1685) target = $region44
      $region43: #{_lambda_.2} parent=27 // pred_region
        _
      $region44: #{_lambda_.2} parent=27 // pred_fallthru
        _
    $region28: #{_lambda_.2} parent=5 // pred_fallthru
      _
    %p1688 = scmp.le.s32.totalorder 2, %s10
    // Predicated region
    $region45: #{_lambda_.2} parent=5 // pred_check
      %p1689 = pneg %p1688
    $region46: #{_lambda_.2} parent=5 // pred_check_branch
      %1691 = sbr.rel (%p1689) target = $region48
    $region47: #{_lambda_.2} parent=5 // pred_region
      %s1692 = ssub.s32 %s10, 2
      // Predicated region
      $region49: #{_lambda_.2} parent=47 // pred_check
        %p1693 = pneg %p114
      $region50: #{_lambda_.2} parent=47 // pred_check_branch
        %1695 = sbr.rel (%p1693) target = $region52
      $region51: #{_lambda_.2} parent=47 // pred_region
        %s1696 = smul.u32 16, %s25
        %p1697 = scmp.lt.s32.totalorder %s23, 1
        %s1698 = scalar_select %p1697, %s23, 1
        %p1699 = scmp.lt.s32.totalorder %s1696, 15
        %s1700 = scalar_select %p1699, %s1696, 15
        %p1701 = scmp.lt.s32.totalorder %s24, 0
        %s1702 = scalar_select %p1701, %s24, 0
        %s1703 = smul.addr %s1700, 2
        %s1704 = sadd.s32 %s1702, %s1703
        %s1705 = smul.addr %s1698, 32
        %s1706 = sadd.s32 %s1704, %s1705
        %s1707 = smul.addr %s1706, 4
        %s1708 = scalar_lea.vmem %s2, %s1707
      $region52: #{_lambda_.2} parent=47 // pred_fallthru
        _
      // Predicated region
      $region53: #{_lambda_.2} parent=47 // pred_check
        %p1709 = pneg %p142
      $region54: #{_lambda_.2} parent=47 // pred_check_branch
        %1711 = sbr.rel (%p1709) target = $region56
      $region55: #{_lambda_.2} parent=47 // pred_region
        %p1712 = scmp.lt.s32.totalorder %s23, 1
        %s1713 = scalar_select %p1712, %s23, 1
        %p1714 = scmp.lt.s32.totalorder %s24, 0
        %s1715 = scalar_select %p1714, %s24, 0
        %s1716 = sadd.s32 %s1715, %s1713
        %s1717 = smul.addr %s1716, 2
        %s1718 = scalar_lea.vmem %s3, %s1717
      $region56: #{_lambda_.2} parent=47 // pred_fallthru
        _
    $region48: #{_lambda_.2} parent=5 // pred_fallthru
      _
  $region6: #{_lambda_.2} parent=0 // loop_footer
    %s14 = sadd.s32 1, %s10
  $region7: #{_lambda_.2} parent=0 // loop_footer_branch
    %9 = sbr.rel target = $region3
  $region8: #{_lambda_.2} parent=0 // loop_exit
    _

</llo_original>
